<compile_context>
chip_gen: v7x
topology: tpu7x:2x2x1
jax: 0.10.0
libtpu: 0.0.40
codegen_flags: <defaults>
</compile_context>

<pallas_src>
import functools

import jax
import jax.numpy as jnp
from jax.experimental import pallas as pl
from jax.experimental.pallas import tpu as pltpu


def _ru(x, m):
    return (x + m - 1) // m * m


def _pick_tile(total, cap):
    """Largest multiple of 128 that divides `total` (itself a multiple of 128) and <= cap."""
    best = 128
    d = 128
    while d <= total and d <= cap:
        if total % d == 0:
            best = d
        d += 128
    return best


def _act_fn(r, act):
    if act == "relu":
        return jnp.maximum(r, 0.0)
    if act == "sigmoid":
        return jax.nn.sigmoid(r)
    if act == "tanh":
        return jnp.tanh(r)
    return r


# ----------------------------------------------------------------------------
# Pallas kernels
# ----------------------------------------------------------------------------
def _mm_kernel(a_ref, b_ref, bias_ref, o_ref, acc_ref, *, act, nsteps):
    """Tiled bf16 matmul (f32 accum) with fused per-output-channel bias + activation."""
    k = pl.program_id(2)

    @pl.when(k == 0)
    def _():
        acc_ref[...] = jnp.zeros_like(acc_ref)

    acc_ref[...] += jnp.dot(a_ref[...], b_ref[...],
                            preferred_element_type=jnp.float32)

    @pl.when(k == nsteps - 1)
    def _():
        r = _act_fn(acc_ref[...] + bias_ref[...], act)     # f32 epilogue (v5e-safe)
        o_ref[...] = r.astype(o_ref.dtype)


def matmul_bias_act(a, w2d, b, act=None, out_dtype=jnp.bfloat16):
    """out = act(a @ w2d + b) via a Pallas MXU kernel (bf16 operands, f32 accum)."""
    M, K = a.shape
    _, N = w2d.shape
    Kp, Np = _ru(K, 128), _ru(N, 128)
    tk = _pick_tile(Kp, 1024)          # exact divisor of K -> no padded-K steps
    tn = _pick_tile(Np, 512)           # full Cout (=256) in one lane-dense tile
    M8 = _ru(M, 8)
    tm = M8 if M8 <= 8 else min(128, _ru(max(M8 // 2, 8), 8))   # >=2 M blocks (v7x dual TC)
    Mp = _ru(M8, tm)
    a_p = jnp.pad(a.astype(jnp.bfloat16), ((0, Mp - M), (0, Kp - K)))
    w_p = w2d.astype(jnp.bfloat16)
    if (Kp, Np) != (K, N):
        w_p = jnp.pad(w_p, ((0, Kp - K), (0, Np - N)))
    b_p = b.astype(jnp.float32)
    if Np != N:
        b_p = jnp.pad(b_p, (0, Np - N))
    b_p = b_p.reshape(1, Np)
    nsteps = Kp // tk
    out = pl.pallas_call(
        functools.partial(_mm_kernel, act=act, nsteps=nsteps),
        out_shape=jax.ShapeDtypeStruct((Mp, Np), out_dtype),
        grid_spec=pltpu.PrefetchScalarGridSpec(
            num_scalar_prefetch=0,
            grid=(Mp // tm, Np // tn, nsteps),
            in_specs=[pl.BlockSpec((tm, tk), lambda i, j, k: (i, k)),
                      pl.BlockSpec((tk, tn), lambda i, j, k: (k, j)),
                      pl.BlockSpec((1, tn), lambda i, j, k: (0, j))],
            out_specs=pl.BlockSpec((tm, tn), lambda i, j, k: (i, j)),
            scratch_shapes=[pltpu.VMEM((tm, tn), jnp.float32)]),
        compiler_params=pltpu.CompilerParams(
            dimension_semantics=("parallel", "parallel", "arbitrary")),
    )(a_p, w_p, b_p)
    return out[:M, :N]


def _conv3x3_kernel(x_ref, w_ref, b_ref, o_ref, acc_ref, *, shifts, cin, act):
    """In-kernel im2col: per-tap (Lout,Cin)x(Cin,Cout) matmuls over a flattened image."""
    L = acc_ref.shape[0]
    acc_ref[...] = jnp.zeros_like(acc_ref)
    for t, sh in enumerate(shifts):                       # static 9-tap unroll
        acc_ref[...] += jnp.dot(x_ref[sh:sh + L, :], w_ref[t * cin:(t + 1) * cin, :],
                                preferred_element_type=jnp.float32)
    r = _act_fn(acc_ref[...] + b_ref[...], act)
    o_ref[...] = r.astype(o_ref.dtype)


def conv3x3(x, p, padding=0, act=None, out_dtype=jnp.bfloat16):
    """3x3 'valid' conv (optionally pre-padded).  x: [B,H,W,Cin] NHWC."""
    B, H, W, Cin = x.shape
    if padding:
        x = jnp.pad(x, ((0, 0), (padding, padding), (padding, padding), (0, 0)))
        H, W = H + 2 * padding, W + 2 * padding
    kh = kw = 3
    Ho, Wo = H - kh + 1, W - kw + 1
    Cout = p["b"].shape[0]
    Lout = Ho * W                               # full-width rows; junk cols sliced off below
    Lout_p = _ru(Lout, 8)
    max_shift = (kh - 1) * W + (kw - 1)
    Lin_p = _ru(Lout_p + max_shift, 8)
    x_flat = x.reshape(B, H * W, Cin).astype(jnp.bfloat16)
    x_flat = jnp.pad(x_flat, ((0, 0), (0, Lin_p - H * W), (0, 0)))
    shifts = tuple(u * W + v for u in range(kh) for v in range(kw))
    out = pl.pallas_call(
        functools.partial(_conv3x3_kernel, shifts=shifts, cin=Cin, act=act),
        out_shape=jax.ShapeDtypeStruct((B, Lout_p, Cout), out_dtype),
        grid_spec=pltpu.PrefetchScalarGridSpec(
            num_scalar_prefetch=0,
            grid=(B,),
            in_specs=[pl.BlockSpec((None, Lin_p, Cin), lambda b: (b, 0, 0)),
                      pl.BlockSpec((kh * kw * Cin, Cout), lambda b: (0, 0)),
                      pl.BlockSpec((1, Cout), lambda b: (0, 0))],
            out_specs=pl.BlockSpec((None, Lout_p, Cout), lambda b: (b, 0, 0)),
            scratch_shapes=[pltpu.VMEM((Lout_p, Cout), jnp.float32)]),
        compiler_params=pltpu.CompilerParams(dimension_semantics=("parallel",)),
    )(x_flat, p["w2d"], p["b"].reshape(1, Cout).astype(jnp.float32))
    out = out[:, :Lout, :].reshape(B, Ho, W, Cout)[:, :, :Wo, :]
    return out


def _gau_attn_kernel(q_ref, kz_ref, vz_ref, vx_ref, emb_ref, self_ref, *, lz, lq):
    """Fused: emb = softmax(Q@Kz)@Vz and self = softmax(Q@Q^T)@Vx for one batch elem."""
    q = q_ref[...]

    def attend(scores, valid, v_ref, out_ref):
        col = jax.lax.broadcasted_iota(jnp.int32, scores.shape, 1)
        s = jnp.where(col < valid, scores, -jnp.inf)      # mask padded key columns
        m = jnp.max(s, axis=-1, keepdims=True)
        p = jnp.exp(s - m)
        p = p * pl.reciprocal(jnp.sum(p, axis=-1, keepdims=True), approx=True)
        out_ref[...] = jnp.dot(p.astype(v_ref.dtype), v_ref[...],
                               preferred_element_type=jnp.float32).astype(out_ref.dtype)

    s_cross = jnp.dot(q, kz_ref[...], preferred_element_type=jnp.float32)
    attend(s_cross, lz, vz_ref, emb_ref)
    s_self = jax.lax.dot_general(q, q, (((1,), (1,)), ((), ())),
                                 preferred_element_type=jnp.float32)
    attend(s_self, lq, vx_ref, self_ref)


def gau_attention_pair(q, kz_src, vz, vx):
    """q,vx: [B,Lq,C]; kz_src,vz: [B,Lz,C] -> (emb, self_emb): [B,Lq,C] each (bf16)."""
    B, Lq, C = q.shape
    Lz = kz_src.shape[1]
    Lqp, Lzp = _ru(Lq, 8), _ru(Lz, 128)
    bf = jnp.bfloat16
    qp = jnp.pad(q.astype(bf), ((0, 0), (0, Lqp - Lq), (0, 0)))
    kzp = jnp.pad(kz_src.astype(bf), ((0, 0), (0, Lzp - Lz), (0, 0))).transpose(0, 2, 1)
    vzp = jnp.pad(vz.astype(bf), ((0, 0), (0, Lzp - Lz), (0, 0)))
    vxp = jnp.pad(vx.astype(bf), ((0, 0), (0, Lqp - Lq), (0, 0)))
    emb, semb = pl.pallas_call(
        functools.partial(_gau_attn_kernel, lz=Lz, lq=Lq),
        out_shape=(jax.ShapeDtypeStruct((B, Lqp, C), bf),
                   jax.ShapeDtypeStruct((B, Lqp, C), bf)),
        grid_spec=pltpu.PrefetchScalarGridSpec(
            num_scalar_prefetch=0,
            grid=(B,),
            in_specs=[pl.BlockSpec((None, Lqp, C), lambda b: (b, 0, 0)),
                      pl.BlockSpec((None, C, Lzp), lambda b: (b, 0, 0)),
                      pl.BlockSpec((None, Lzp, C), lambda b: (b, 0, 0)),
                      pl.BlockSpec((None, Lqp, C), lambda b: (b, 0, 0))],
            out_specs=(pl.BlockSpec((None, Lqp, C), lambda b: (b, 0, 0)),
                       pl.BlockSpec((None, Lqp, C), lambda b: (b, 0, 0)))),
        compiler_params=pltpu.CompilerParams(dimension_semantics=("parallel",)),
    )(qp, kzp, vzp, vxp)
    return emb[:, :Lq, :], semb[:, :Lq, :]


def _xcorr_kernel(s_ref, k_ref, o_ref, *, hk, wk, ho, wo):
    """Per-batch depthwise cross-correlation (channels are lanes), f32 accumulation."""
    acc = jnp.zeros(o_ref.shape, jnp.float32)
    for u in range(hk):
        for v in range(wk):
            acc = acc + (s_ref[u:u + ho, v:v + wo, :].astype(jnp.float32) *
                         k_ref[u:u + 1, v:v + 1, :].astype(jnp.float32))
    o_ref[...] = acc.astype(o_ref.dtype)


def xcorr_depthwise(search, kernel):
    """search: [B,Hs,Ws,C], kernel: [B,hk,wk,C] -> [B,Ho,Wo,C] (bf16)."""
    B, Hs, Ws, C = search.shape
    hk, wk = kernel.shape[1:3]
    Ho, Wo = Hs - hk + 1, Ws - wk + 1
    return pl.pallas_call(
        functools.partial(_xcorr_kernel, hk=hk, wk=wk, ho=Ho, wo=Wo),
        out_shape=jax.ShapeDtypeStruct((B, Ho, Wo, C), jnp.bfloat16),
        grid_spec=pltpu.PrefetchScalarGridSpec(
            num_scalar_prefetch=0,
            grid=(B,),
            in_specs=[pl.BlockSpec((None, Hs, Ws, C), lambda b: (b, 0, 0, 0)),
                      pl.BlockSpec((None, hk, wk, C), lambda b: (b, 0, 0, 0))],
            out_specs=pl.BlockSpec((None, Ho, Wo, C), lambda b: (b, 0, 0, 0))),
        compiler_params=pltpu.CompilerParams(dimension_semantics=("parallel",)),
    )(search.astype(jnp.bfloat16), kernel.astype(jnp.bfloat16))


# ----------------------------------------------------------------------------
# Conv dispatcher (tiny layers bypass Pallas; 1x1 -> matmul; 3x3 -> conv3x3)
# ----------------------------------------------------------------------------
def conv2d(x, p, ksize, padding=0, act=None, out_dtype=jnp.bfloat16):
    """x: [B,H,W,Cin] NHWC; p['w']: [kh,kw,Cin,Cout] (f32), p['w2d']: flattened bf16."""
    B, H, W, Cin = x.shape
    Cout = p["b"].shape[0]
    if ksize == 1:
        if Cin < 64 or Cout < 64:
            # tiny layer: plain jnp (padding this to 128 lanes would waste >8x MXU work)
            y = x.astype(jnp.float32).reshape(B * H * W, Cin) @ p["w"].reshape(Cin, Cout)
            y = _act_fn(y + p["b"], act)
            return y.reshape(B, H, W, Cout).astype(out_dtype)
        a = x.reshape(B * H * W, Cin)
        out = matmul_bias_act(a, p["w2d"], p["b"], act=act, out_dtype=out_dtype)
        return out.reshape(B, H, W, Cout)
    return conv3x3(x, p, padding=padding, act=act, out_dtype=out_dtype)


# ----------------------------------------------------------------------------
# Deterministic parameter construction (synthetic; conv+BN folded to w/bias)
# ----------------------------------------------------------------------------
class KeyGen:
    def __init__(self, key):
        self.key = key

    def __call__(self):
        self.key, k = jax.random.split(self.key)
        return k


def conv_p(kg, kh, kw, cin, cout, zero_bias=False):
    w = 0.05 * jax.random.normal(kg(), (kh, kw, cin, cout), jnp.float32)
    if zero_bias:
        b = jnp.zeros((cout,), jnp.float32)
    else:
        b = 0.05 * jax.random.normal(kg(), (cout,), jnp.float32)
    return {"w": w,
            "w2d": w.reshape(kh * kw * cin, cout).astype(jnp.bfloat16),
            "b": b}


def gau_params(kg, c):
    return {"support": conv_p(kg, 1, 1, c, c),
            "query": conv_p(kg, 1, 1, c, c),
            "g": conv_p(kg, 1, 1, c, c),
            "fi": conv_p(kg, 1, 1, 3 * c, c)}


def cbam_params(kg, c=256):
    return {"fc1": conv_p(kg, 1, 1, c, c // 16, zero_bias=True),
            "fc2": conv_p(kg, 1, 1, c // 16, c, zero_bias=True),
            "sp": conv_p(kg, 1, 1, 2, 1)}


def shapehand_params(kg, c=256):
    return {"downsample": conv_p(kg, 1, 1, 3 * c, c),
            "downsample2": conv_p(kg, 1, 1, 3 * c, c),
            "conv_kernel": [conv_p(kg, 3, 3, c, c) for _ in range(3)],
            "conv_search": [conv_p(kg, 3, 3, c, c) for _ in range(3)],
            "head": [conv_p(kg, 1, 1, c, c), conv_p(kg, 1, 1, c, 2)],
            "merge": [conv_p(kg, 3, 3, 2 * c, c), conv_p(kg, 1, 1, c, c)],
            "selfatt": gau_params(kg, c)}


def dwx_params(kg, c=256):
    return {"conv_kernel": conv_p(kg, 3, 3, c, c),
            "conv_search": conv_p(kg, 3, 3, c, c),
            "conv_kernel2": [conv_p(kg, 3, 3, c, c) for _ in range(3)],
            "conv_search2": [conv_p(kg, 3, 3, c, c) for _ in range(3)],
            "head": [conv_p(kg, 1, 1, c, c), conv_p(kg, 1, 1, c, 2)],
            "head2": [conv_p(kg, 1, 1, c, c), conv_p(kg, 1, 1, c, 4)],
            "cls": conv_p(kg, 1, 1, c, c),
            "loc": conv_p(kg, 1, 1, c, c),
            "merge": [conv_p(kg, 3, 3, 2 * c, c), conv_p(kg, 1, 1, c, c)],
            "fi": conv_p(kg, 1, 1, 2 * c, c),
            "attloc": cbam_params(kg, c),
            "offset": conv_p(kg, 1, 1, 2, 18),
            "deform": conv_p(kg, 3, 3, c, c),
            "selfatt": gau_params(kg, c)}


def build_params(kg, num_levels=3):
    return {"creatshape": shapehand_params(kg),
            "box": [dwx_params(kg) for _ in range(num_levels)]}


# ----------------------------------------------------------------------------
# Module forwards (glue; all heavy math calls the Pallas kernels above)
# ----------------------------------------------------------------------------
def gau_forward(p, zf, xf):
    xf_trans = conv2d(xf, p["query"], 1)
    zf_trans = conv2d(zf, p["support"], 1)
    xf_g = conv2d(xf, p["g"], 1, act="relu")
    zf_g = conv2d(zf, p["g"], 1, act="relu")
    B, Hx, Wx, C = xf_trans.shape
    Hz, Wz = zf_trans.shape[1:3]
    Lx, Lz = Hx * Wx, Hz * Wz
    emb, semb = gau_attention_pair(xf_trans.reshape(B, Lx, C),
                                   zf_trans.reshape(B, Lz, C),
                                   zf_g.reshape(B, Lz, C),
                                   xf_g.reshape(B, Lx, C))
    emb = emb.reshape(B, Hx, Wx, C)
    semb = semb.reshape(B, Hx, Wx, C)
    out = jnp.concatenate([emb, semb, xf_g], axis=-1)
    return conv2d(out, p["fi"], 1, act="relu")


def cbam_forward(p, x):
    B, H, W, C = x.shape
    xf = x.astype(jnp.float32)
    avg = jnp.mean(xf, axis=(1, 2))
    mx = jnp.max(xf, axis=(1, 2))
    w1 = p["fc1"]["w"].reshape(C, C // 16)
    w2 = p["fc2"]["w"].reshape(C // 16, C)

    def fc(v):                                   # tiny (C//16=16 wide): plain jnp
        return jnp.maximum(v @ w1, 0.0) @ w2

    y = jax.nn.sigmoid(fc(avg) + fc(mx)).reshape(B, 1, 1, C)
    ca = xf * y
    avg_m = jnp.mean(ca, axis=-1, keepdims=True)
    max_m = jnp.max(ca, axis=-1, keepdims=True)
    m = jnp.concatenate([avg_m, max_m], axis=-1)
    m = conv2d(m, p["sp"], 1, act="sigmoid", out_dtype=jnp.float32)
    sa = ca * m
    return jnp.maximum(xf + sa, 0.0).astype(jnp.bfloat16)


def dodeform_forward(p_deform, feature, offset):
    # TODO(synk): DeformConv2d is external to the reference file; approximated with a
    # standard 3x3 conv (padding=1); the offset tensor is computed but not consumed.
    del offset
    f1 = conv2d(feature, p_deform, 3, padding=1, act="relu")
    return jnp.maximum(f1.astype(jnp.float32) + feature.astype(jnp.float32),
                       0.0).astype(jnp.bfloat16)


def shapehand_forward(p, z_fs, z_fs2, x_fs, mask):
    z = jnp.concatenate(z_fs, axis=-1)
    x = jnp.concatenate(x_fs, axis=-1)
    z2 = jnp.concatenate(z_fs2, axis=-1)
    shape_kernel = conv2d(z, p["downsample"], 1)          # conv + BN, no relu
    shape_kernel2 = conv2d(z2, p["downsample"], 1)        # reference reuses 'downsample'
    shape_search = conv2d(x, p["downsample2"], 1)
    kernel = shape_kernel * mask
    kernel = jnp.concatenate([kernel, shape_kernel2.astype(kernel.dtype)], axis=-1)
    kernel = conv2d(kernel, p["merge"][0], 3, padding=1, act="relu")
    kernel = conv2d(kernel, p["merge"][1], 1, act="relu")
    search = shape_search
    for lp in p["conv_search"]:
        search = conv2d(search, lp, 3, act="relu")
    for lp in p["conv_kernel"]:
        kernel = conv2d(kernel, lp, 3, act="relu")
    feature = gau_forward(p["selfatt"], kernel, search)
    h = conv2d(feature, p["head"][0], 1, act="relu")
    return conv2d(h, p["head"][1], 1, act="tanh", out_dtype=jnp.float32)


def dwx_forward(p, z, z2, x, mask, shape):
    kernel = z * mask
    kernel = jnp.concatenate([kernel, z2.astype(kernel.dtype)], axis=-1)
    kernel = conv2d(kernel, p["merge"][0], 3, padding=1, act="relu")
    kernel = conv2d(kernel, p["merge"][1], 1, act="relu")
    for lp in p["conv_kernel2"]:
        kernel = conv2d(kernel, lp, 3, act="relu")
    search2 = x
    for lp in p["conv_search2"]:
        search2 = conv2d(search2, lp, 3, act="relu")
    feature1 = gau_forward(p["selfatt"], kernel, search2)
    search = conv2d(x, p["conv_search"], 3, act="relu")
    zc = z[:, 4:11, 4:11, :]
    k1 = conv2d(zc, p["conv_kernel"], 3, act="relu")
    feature2 = xcorr_depthwise(search, k1)
    offset = conv2d(shape, p["offset"], 1)
    feature = conv2d(jnp.concatenate([feature1, feature2], axis=-1), p["fi"], 1, act="relu")
    feature = cbam_forward(p["attloc"], feature)
    clsfeature = conv2d(feature, p["cls"], 1, act="relu")
    thefeature = dodeform_forward(p["deform"], feature, offset)
    locfeature = conv2d(thefeature, p["loc"], 1, act="relu")
    cls = conv2d(conv2d(clsfeature, p["head"][0], 1, act="relu"),
                 p["head"][1], 1, out_dtype=jnp.float32)
    loc = conv2d(conv2d(locfeature, p["head2"][0], 1, act="relu"),
                 p["head2"][1], 1, out_dtype=jnp.float32)
    return cls, loc


def multiban_forward_nhwc(params, z_fs, z_fs2, x_fs, t_box):
    B, Hz, Wz, _ = z_fs[0].shape
    roi = jnp.round((t_box.astype(jnp.float32) + 1.0 - 7.0) / 8.0).astype(jnp.int32)
    r0 = jnp.maximum(roi[:, 1], 0)[:, None]
    r1 = jnp.minimum(roi[:, 3], 14)[:, None]
    c0 = jnp.maximum(roi[:, 0], 0)[:, None]
    c1 = jnp.minimum(roi[:, 2], 14)[:, None]
    rows = jnp.arange(Hz)[None, :]
    cols = jnp.arange(Wz)[None, :]
    row_m = (rows >= r0) & (rows < r1)
    col_m = (cols >= c0) & (cols < c1)
    mask = (row_m[:, :, None] & col_m[:, None, :]).astype(jnp.float32)[..., None]  # [B,H,W,1]

    shape = shapehand_forward(params["creatshape"], z_fs, z_fs2, x_fs, mask)

    # TODO(synk): the three pyramid levels could be folded into a single level-indexed
    # grid (scalar-prefetch weight selection) to cut launches further; kept separate here.
    cls_list, loc_list = [], []
    for i, (z, z2, x) in enumerate(zip(z_fs, z_fs2, x_fs)):
        c, l = dwx_forward(params["box"][i], z, z2, x, mask, shape)
        cls_list.append(c)
        loc_list.append(l)
    cls = sum(cls_list) / len(cls_list)
    loc = sum(loc_list) / len(loc_list)
    return cls, loc, jnp.exp(shape)


def multiban_forward(params, z_fs_nchw, z_fs2_nchw, x_fs_nchw, t_box):
    to_nhwc = lambda t: jnp.transpose(t, (0, 2, 3, 1))
    z_fs = [to_nhwc(t) for t in z_fs_nchw]
    z_fs2 = [to_nhwc(t) for t in z_fs2_nchw]
    x_fs = [to_nhwc(t) for t in x_fs_nchw]
    cls, loc, shape = multiban_forward_nhwc(params, z_fs, z_fs2, x_fs, t_box)
    to_nchw = lambda t: jnp.transpose(t, (0, 3, 1, 2))
    return to_nchw(cls), to_nchw(loc), to_nchw(shape)


# ----------------------------------------------------------------------------
if __name__ == "__main__":
    root = jax.random.PRNGKey(0)
    pkey, dkey = jax.random.split(root)
    kg = KeyGen(pkey)
    params = build_params(kg, num_levels=3)

    B, C, HZ, HX = 2, 256, 15, 15   # small-but-consistent: template 15x15, search 15x15
    ks = jax.random.split(dkey, 9)
    z_fs = [0.1 * jax.random.normal(ks[i], (B, C, HZ, HZ), jnp.float32) for i in range(3)]
    z_fs2 = [0.1 * jax.random.normal(ks[3 + i], (B, C, HZ, HZ), jnp.float32) for i in range(3)]
    x_fs = [0.1 * jax.random.normal(ks[6 + i], (B, C, HX, HX), jnp.float32) for i in range(3)]
    t_box = jnp.array([[14.0, 14.0, 90.0, 90.0],
                       [22.0, 30.0, 70.0, 78.0]], jnp.float32)

    cls, loc, shape = multiban_forward(params, z_fs, z_fs2, x_fs, t_box)
    jax.block_until_ready((cls, loc, shape))
    assert cls.shape == (B, 2, 9, 9) and loc.shape == (B, 4, 9, 9) and shape.shape == (B, 2, 9, 9)
    assert cls.dtype == jnp.float32 and loc.dtype == jnp.float32 and shape.dtype == jnp.float32
    print("KERNEL_OK")
</pallas_src>

<mosaic_0001>
module attributes {stable_mosaic.version = 11 : i64} {
  func.func @_mm_kernel(%arg0: i32, %arg1: i32, %arg2: i32, %arg3: memref<128x768xbf16, #tpu.memory_space<vmem>>, %arg4: memref<768x256xbf16, #tpu.memory_space<vmem>>, %arg5: memref<1x256xf32, #tpu.memory_space<vmem>>, %arg6: memref<128x256xbf16, #tpu.memory_space<vmem>>, %arg7: memref<128x256xf32, #tpu.memory_space<vmem>>) attributes {dimension_semantics = [#tpu.dimension_semantics<parallel>, #tpu.dimension_semantics<parallel>, #tpu.dimension_semantics<arbitrary>], iteration_bounds = array<i64: 4, 1, 1>, scalar_prefetch = 0 : i64, scratch_operands = 1 : i64, tpu.core_type = #tpu.core_type<tc>, window_params = [{transform_indices = @transform_0, window_bounds = array<i64: 128, 768>}, {transform_indices = @transform_1, window_bounds = array<i64: 768, 256>}, {transform_indices = @transform_2, window_bounds = array<i64: 1, 256>}, {transform_indices = @transform_3, window_bounds = array<i64: 128, 256>}]} {
    %c0_i32 = arith.constant 0 : i32
    %0 = arith.cmpi eq, %arg2, %c0_i32 : i32
    %1 = arith.extui %0 : i1 to i32
    %c0_i32_0 = arith.constant 0 : i32
    %2 = arith.cmpi ne, %1, %c0_i32_0 : i32
    scf.if %2 {
      %cst_10 = arith.constant 0.000000e+00 : f32
      %12 = vector.broadcast %cst_10 : f32 to vector<128x256xf32>
      %c0_11 = arith.constant 0 : index
      %c0_12 = arith.constant 0 : index
      %13 = vector.load %arg7[%c0_11, %c0_12] : memref<128x256xf32, #tpu.memory_space<vmem>>, vector<128x256xf32>
      tpu.vector_store %arg7[%c0_11, %c0_12], %12 {strides = array<i32>} : memref<128x256xf32, #tpu.memory_space<vmem>>, vector<128x256xf32>,
    } else {
    }
    %c0 = arith.constant 0 : index
    %c0_1 = arith.constant 0 : index
    %3 = vector.load %arg7[%c0, %c0_1] : memref<128x256xf32, #tpu.memory_space<vmem>>, vector<128x256xf32>
    %c0_2 = arith.constant 0 : index
    %c0_3 = arith.constant 0 : index
    %4 = vector.load %arg3[%c0_2, %c0_3] : memref<128x768xbf16, #tpu.memory_space<vmem>>, vector<128x768xbf16>
    %c0_4 = arith.constant 0 : index
    %c0_5 = arith.constant 0 : index
    %5 = vector.load %arg4[%c0_4, %c0_5] : memref<768x256xbf16, #tpu.memory_space<vmem>>, vector<768x256xbf16>
    %cst = arith.constant dense<0.000000e+00> : vector<128x256xf32>
    %6 = tpu.matmul %4, %5, %cst {dimension_numbers = #tpu.dot_dimension_numbers<[1], [0], [0], [1], [0, 0, 1, 1], [], []>} : vector<128x768xbf16>, vector<768x256xbf16>, vector<128x256xf32> -> vector<128x256xf32>
    %7 = arith.addf %3, %6 : vector<128x256xf32>
    %c0_6 = arith.constant 0 : index
    %c0_7 = arith.constant 0 : index
    %8 = vector.load %arg7[%c0_6, %c0_7] : memref<128x256xf32, #tpu.memory_space<vmem>>, vector<128x256xf32>
    tpu.vector_store %arg7[%c0_6, %c0_7], %7 {strides = array<i32>} : memref<128x256xf32, #tpu.memory_space<vmem>>, vector<128x256xf32>,
    %c0_i32_8 = arith.constant 0 : i32
    %9 = arith.cmpi eq, %arg2, %c0_i32_8 : i32
    %10 = arith.extui %9 : i1 to i32
    %c0_i32_9 = arith.constant 0 : i32
    %11 = arith.cmpi ne, %10, %c0_i32_9 : i32
    scf.if %11 {
      %c0_10 = arith.constant 0 : index
      %c0_11 = arith.constant 0 : index
      %12 = vector.load %arg7[%c0_10, %c0_11] : memref<128x256xf32, #tpu.memory_space<vmem>>, vector<128x256xf32>
      %c0_12 = arith.constant 0 : index
      %c0_13 = arith.constant 0 : index
      %13 = vector.load %arg5[%c0_12, %c0_13] : memref<1x256xf32, #tpu.memory_space<vmem>>, vector<1x256xf32>
      %14 = vector.broadcast %13 : vector<1x256xf32> to vector<128x256xf32>
      %15 = arith.addf %12, %14 : vector<128x256xf32>
      %16 = arith.truncf %15 : vector<128x256xf32> to vector<128x256xbf16>
      %c0_14 = arith.constant 0 : index
      %c0_15 = arith.constant 0 : index
      %17 = vector.load %arg6[%c0_14, %c0_15] : memref<128x256xbf16, #tpu.memory_space<vmem>>, vector<128x256xbf16>
      tpu.vector_store %arg6[%c0_14, %c0_15], %16 {strides = array<i32>} : memref<128x256xbf16, #tpu.memory_space<vmem>>, vector<128x256xbf16>,
    } else {
    }
    return
  }
  func.func @transform_0(%arg0: i32, %arg1: i32, %arg2: i32) -> (i32, i32) {
    %c0_i32 = arith.constant 0 : i32
    return %arg0, %arg2 : i32, i32
  }
  func.func @transform_1(%arg0: i32, %arg1: i32, %arg2: i32) -> (i32, i32) {
    %c0_i32 = arith.constant 0 : i32
    return %arg2, %arg1 : i32, i32
  }
  func.func @transform_2(%arg0: i32, %arg1: i32, %arg2: i32) -> (i32, i32) {
    %c0_i32 = arith.constant 0 : i32
    %c0_i32_0 = arith.constant 0 : i32
    return %c0_i32, %arg1 : i32, i32
  }
  func.func @transform_3(%arg0: i32, %arg1: i32, %arg2: i32) -> (i32, i32) {
    %c0_i32 = arith.constant 0 : i32
    return %arg0, %arg1 : i32, i32
  }
}

</mosaic_0001>

<llo_original>
// kernel: tpu_custom_call.1
$region0: #{tpu_custom_call.1}
  #allocation0 [shape = 'u32[]', space=smem, size = 0x4, offset = 0x4, fixed_abs, tag = 'smem constant byte address 0x4 - core index']
  #allocation1 [shape = 'u32[144,128]{1,0:T(1,128)}', space=vmem, size = 0x12000, scoped, tag = 'internal scratch']
  #allocation2 [shape = 'f32[128,256]{1,0:T(8,128)}', space=vmem, size = 0x20000, scoped, tag = 'scratch operand']
  %s0 = inlined_call_operand.hbm [shape: bf16[512,768], index: 0, kind: input, shape index: {}]
  %s1 = inlined_call_operand.hbm [shape: bf16[768,256], index: 1, kind: input, shape index: {}]
  %s2 = inlined_call_operand.vmem [shape: f32[1,256], index: 2, kind: input, shape index: {}]
  %s3 = inlined_call_operand.hbm [shape: bf16[512,256], index: 3, kind: output, shape index: {}]
  %s4 = sld [smem:[#allocation0]]
  $region61: #{tpu_custom_call.1} parent=0
    _
  %s6 = ssub.s32 1, %s4
  %s7 = scalar_select 0, %s6, %s4
  $region1: #{tpu_custom_call.1} parent=0
    #allocation3 [shape = 'u8[393216]{0}', space=vmem, size = 0x60000, scoped, tag = 'input window, operand 0']
    #allocation4 [shape = 's32[2]{0}', space=sflag, size = 0x8, scoped, tag = 'scoped memory for tpu_custom_call.1']
    #allocation5 [shape = 's32[2]{0}', space=sflag, size = 0x8, scoped, tag = 'scoped memory for tpu_custom_call.1']
    #allocation6 [shape = 'u8[393216]{0}', space=vmem, size = 0x60000, scoped, tag = 'input window, operand 1, single buffered']
    #allocation7 [shape = 's32[1]{0}', space=sflag, size = 0x4, scoped, tag = 'scoped memory for tpu_custom_call.1']
    #allocation8 [shape = 'u8[131072]{0}', space=vmem, size = 0x20000, scoped, tag = 'output window, operand 0']
    %8 = vsyncpa [#allocation4], 0
    %s9 = scalar_lea.sflag [#allocation4], 1
    %10 = vsyncpa %s9, 0
    %11 = vsyncpa [#allocation7], 0
    %12 = vsyncpa [#allocation5], 0
    %s13 = scalar_lea.sflag [#allocation5], 1
    %14 = vsyncpa %s13, 0
    loop: start=0, step=1, limit=6
    $region2: #{tpu_custom_call.1} parent=1 // loop_pre_header
      _
    $region3: #{tpu_custom_call.1} parent=1 // loop_header
      %s16 = sphi 0, %s20
      %p17 = scmp.ge.s32.totalorder %s16, 6
      %s23 = sphi 0, %s42
      %s24 = sphi 0, %s38
      %s25 = sphi 0, %s34
      %s26 = sphi 0, %s23
      %s27 = sphi 0, %s24
      %s28 = sphi 0, %s25
      %s29 = sphi 0, %s26
      %s30 = sphi 0, %s27
      %s31 = sphi 0, %s28
      %s47 = sphi 0, %s49
      %s50 = sphi 0, %s47
      %s51 = sphi 0, %s50
      %s67 = sphi 0, %s51
      %s75 = sphi 0, %s77
      %s78 = sphi 0, %s75
      %s79 = sphi 0, %s78
      %s95 = sphi 0, %s79
      %s101 = sphi 0, %s103
      %s104 = sphi 0, %s101
      %s105 = sphi 0, %s104
      %s121 = sphi 0, %s105
      %s129 = sphi 0, %s131
      %s132 = sphi 0, %s129
      %s133 = sphi 0, %s132
      %s149 = sphi 0, %s133
    $region4: #{tpu_custom_call.1} parent=1 // loop_header_branch
      %19 = sbr.rel (%p17) target = $region8
    $region5: #{tpu_custom_call.1} parent=1 // loop_body
      %s21 = ssub.s32 %s16, 1
      %s22 = ssub.s32 %s16, 2
      %s32 = sadd.s32 1, %s25
      %p33 = scmp.ge.s32.totalorder %s32, 1
      %s34 = scalar_select %p33, 0, %s32
      %s35 = sadd.s32 1, %s24
      %s36 = scalar_select %p33, %s35, %s24
      %p37 = scmp.ge.s32.totalorder %s36, 1
      %s38 = scalar_select %p37, 0, %s36
      %s39 = sadd.s32 1, %s23
      %s40 = scalar_select %p37, %s39, %s23
      %p41 = scmp.ge.s32.totalorder %s40, 4
      %s42 = scalar_select %p41, 0, %s40
      %s43 = ssub.s32 %s23, %s42
      %s44 = ssub.s32 %s25, %s34
      %s45 = sor.u32 %s43, %s44
      %p46 = scmp.eq.s32.totalorder %s45, 0
      %s48 = sadd.s32 %s47, 1
      %s49 = scalar_select %p46, %s47, %s48
      %p52 = pneg %p46
      %p53 = scmp.eq.s32.totalorder %s16, 3
      %p54 = por %p52, %p53
      %p55 = scmp.ne.s32.totalorder %s47, %s50
      %p56 = scmp.eq.s32.totalorder %s16, 0
      %p57 = por %p55, %p56
      %p58 = scmp.ne.s32.totalorder %s47, %s50
      %p59 = scmp.eq.s32.totalorder %s21, 3
      %p60 = por %p58, %p59
      %p61 = scmp.ne.s32.totalorder %s50, %s51
      %p62 = scmp.eq.s32.totalorder %s21, 0
      %p63 = por %p61, %p62
      %p64 = scmp.ne.s32.totalorder %s50, %s51
      %p65 = scmp.eq.s32.totalorder %s22, 3
      %p66 = por %p64, %p65
      %p68 = scmp.ne.s32.totalorder %s51, %s67
      %p69 = scmp.eq.s32.totalorder %s22, 0
      %p70 = por %p68, %p69
      %s71 = ssub.s32 %s25, %s34
      %s72 = ssub.s32 %s24, %s38
      %s73 = sor.u32 %s71, %s72
      %p74 = scmp.eq.s32.totalorder %s73, 0
      %s76 = sadd.s32 %s75, 1
      %s77 = scalar_select %p74, %s75, %s76
      %p80 = pneg %p74
      %p81 = scmp.eq.s32.totalorder %s16, 3
      %p82 = por %p80, %p81
      %p83 = scmp.ne.s32.totalorder %s75, %s78
      %p84 = scmp.eq.s32.totalorder %s16, 0
      %p85 = por %p83, %p84
      %p86 = scmp.ne.s32.totalorder %s75, %s78
      %p87 = scmp.eq.s32.totalorder %s21, 3
      %p88 = por %p86, %p87
      %p89 = scmp.ne.s32.totalorder %s78, %s79
      %p90 = scmp.eq.s32.totalorder %s21, 0
      %p91 = por %p89, %p90
      %p92 = scmp.ne.s32.totalorder %s78, %s79
      %p93 = scmp.eq.s32.totalorder %s22, 3
      %p94 = por %p92, %p93
      %p96 = scmp.ne.s32.totalorder %s79, %s95
      %p97 = scmp.eq.s32.totalorder %s22, 0
      %p98 = por %p96, %p97
      %s99 = ssub.s32 %s24, %s38
      %p100 = scmp.eq.s32.totalorder %s99, 0
      %s102 = sadd.s32 %s101, 1
      %s103 = scalar_select %p100, %s101, %s102
      %p106 = pneg %p100
      %p107 = scmp.eq.s32.totalorder %s16, 3
      %p108 = por %p106, %p107
      %p109 = scmp.ne.s32.totalorder %s101, %s104
      %p110 = scmp.eq.s32.totalorder %s16, 0
      %p111 = por %p109, %p110
      %p112 = scmp.ne.s32.totalorder %s101, %s104
      %p113 = scmp.eq.s32.totalorder %s21, 3
      %p114 = por %p112, %p113
      %p115 = scmp.ne.s32.totalorder %s104, %s105
      %p116 = scmp.eq.s32.totalorder %s21, 0
      %p117 = por %p115, %p116
      %p118 = scmp.ne.s32.totalorder %s104, %s105
      %p119 = scmp.eq.s32.totalorder %s22, 3
      %p120 = por %p118, %p119
      %p122 = scmp.ne.s32.totalorder %s105, %s121
      %p123 = scmp.eq.s32.totalorder %s22, 0
      %p124 = por %p122, %p123
      %s125 = ssub.s32 %s23, %s42
      %s126 = ssub.s32 %s24, %s38
      %s127 = sor.u32 %s125, %s126
      %p128 = scmp.eq.s32.totalorder %s127, 0
      %s130 = sadd.s32 %s129, 1
      %s131 = scalar_select %p128, %s129, %s130
      %p134 = pneg %p128
      %p135 = scmp.eq.s32.totalorder %s16, 3
      %p136 = por %p134, %p135
      %p137 = scmp.ne.s32.totalorder %s129, %s132
      %p138 = scmp.eq.s32.totalorder %s16, 0
      %p139 = por %p137, %p138
      %p140 = scmp.ne.s32.totalorder %s129, %s132
      %p141 = scmp.eq.s32.totalorder %s21, 3
      %p142 = por %p140, %p141
      %p143 = scmp.ne.s32.totalorder %s132, %s133
      %p144 = scmp.eq.s32.totalorder %s21, 0
      %p145 = por %p143, %p144
      %p146 = scmp.ne.s32.totalorder %s132, %s133
      %p147 = scmp.eq.s32.totalorder %s22, 3
      %p148 = por %p146, %p147
      %p150 = scmp.ne.s32.totalorder %s133, %s149
      %p151 = scmp.eq.s32.totalorder %s22, 0
      %p152 = por %p150, %p151
      %p153 = scmp.le.s32.totalorder 1, %s16
      %p154 = scmp.lt.s32.totalorder %s16, 5
      %p155 = pnand %p153, %p154
      %p156 = pneg %p155
      // Predicated region
      $region9: #{tpu_custom_call.1} parent=5 // pred_check
        _
      $region10: #{tpu_custom_call.1} parent=5 // pred_check_branch
        %158 = sbr.rel (%p155) target = $region12
      $region11: #{tpu_custom_call.1} parent=5 // pred_region
        %s159 = ssub.s32 %s16, 1
        // Predicated region
        $region13: #{tpu_custom_call.1} parent=11 // pred_check
          %p160 = pneg %p91
        $region14: #{tpu_custom_call.1} parent=11 // pred_check_branch
          %162 = sbr.rel (%p160) target = $region16
        $region15: #{tpu_custom_call.1} parent=11 // pred_region
          %s163 = smul.u32 96, %s28
          %s164 = smul.u32 2, %s27
          %s166 = ssub.s32 12288, 12288
          %167 = vsyncadd [#allocation7], %s166
          %s168 = smul.addr %s163, 2
          %s169 = sadd.s32 %s164, %s168
          %s170 = smul.addr %s169, 64
          %s171 = scalar_lea.hbm %s1, %s170
          %s172 = sshll.u32 [#allocation6], 4
          %s173 = int_to_ptr.vmem [resolvable:$true] %s172
          %178 = dma.hbm_to_vmem [thread:$0]  %s171, 12288, %s173, [#allocation7], 128, 128, 8
        $region16: #{tpu_custom_call.1} parent=11 // pred_fallthru
          _
        // Predicated region
        $region17: #{tpu_custom_call.1} parent=11 // pred_check
          %p179 = pneg %p117
        $region18: #{tpu_custom_call.1} parent=11 // pred_check_branch
          %181 = sbr.rel (%p179) target = $region20
        $region19: #{tpu_custom_call.1} parent=11 // pred_region
          %s182 = smul.u32 2, %s27
          %p183 = scmp.lt.s32.totalorder %s182, 1
          %s184 = scalar_select %p183, %s182, 1
          %s185 = scalar_lea.vmem %s2, %s184
          %s186 = smul.u32 2, %s27
        $region20: #{tpu_custom_call.1} parent=11 // pred_fallthru
          _
      $region12: #{tpu_custom_call.1} parent=5 // pred_fallthru
        _
      %p187 = scmp.lt.s32.totalorder %s16, 4
      // Predicated region
      $region21: #{tpu_custom_call.1} parent=5 // pred_check
        %p188 = pneg %p187
      $region22: #{tpu_custom_call.1} parent=5 // pred_check_branch
        %190 = sbr.rel (%p188) target = $region24
      $region23: #{tpu_custom_call.1} parent=5 // pred_region
        // Predicated region
        $region25: #{tpu_custom_call.1} parent=23 // pred_check
          %p191 = pneg %p57
        $region26: #{tpu_custom_call.1} parent=23 // pred_check_branch
          %193 = sbr.rel (%p191) target = $region28
        $region27: #{tpu_custom_call.1} parent=23 // pred_region
          %s194 = sand.u32 %s47, 1
          %s195 = scalar_lea.sflag [#allocation4], %s194
          %s196 = sand.u32 %s47, 1
          %s197 = smul.addr %s196, 384
          %s198 = scalar_lea.vmem [#allocation3], %s197
          %s199 = smul.u32 16, %s23
          %s200 = smul.u32 6, %s25
          %s202 = ssub.s32 6144, 6144
          %203 = vsyncadd %s195, %s202
          %s204 = smul.addr %s199, 6
          %s205 = sadd.s32 %s200, %s204
          %s206 = smul.addr %s205, 64
          %s207 = scalar_lea.hbm %s0, %s206
          %s208 = sshll.u32 %s198, 4
          %s209 = int_to_ptr.vmem [resolvable:$true] %s208
          %214 = dma.hbm_to_vmem [thread:$0]  %s207, 6144, %s209, %s195, 384, 384, 24
        $region28: #{tpu_custom_call.1} parent=23 // pred_fallthru
          _
      $region24: #{tpu_custom_call.1} parent=5 // pred_fallthru
        _
      %p215 = scmp.le.s32.totalorder 1, %s16
      %p216 = scmp.lt.s32.totalorder %s16, 5
      %p217 = pnand %p215, %p216
      %p218 = pneg %p217
      // Predicated region
      $region29: #{tpu_custom_call.1} parent=5 // pred_check
        _
      $region30: #{tpu_custom_call.1} parent=5 // pred_check_branch
        %220 = sbr.rel (%p217) target = $region32
      $region31: #{tpu_custom_call.1} parent=5 // pred_region
        %s221 = ssub.s32 %s16, 1
        %s222 = sand.u32 %s50, 1
        %s223 = scalar_lea.sflag [#allocation4], %s222
        %s224 = sand.u32 %s50, 1
        %s225 = smul.addr %s224, 384
        %s226 = scalar_lea.vmem [#allocation3], %s225
        // Predicated region
        $region33: #{tpu_custom_call.1} parent=31 // pred_check
          %p227 = pneg %p63
        $region34: #{tpu_custom_call.1} parent=31 // pred_check_branch
          %229 = sbr.rel (%p227) target = $region36
        $region35: #{tpu_custom_call.1} parent=31 // pred_region
          %230 = dma.done %s223, 6144
        $region36: #{tpu_custom_call.1} parent=31 // pred_fallthru
          _
        // Predicated region
        $region37: #{tpu_custom_call.1} parent=31 // pred_check
          %p231 = pneg %p91
        $region38: #{tpu_custom_call.1} parent=31 // pred_check_branch
          %233 = sbr.rel (%p231) target = $region40
        $region39: #{tpu_custom_call.1} parent=31 // pred_region
          %234 = dma.done [#allocation7], 12288
        $region40: #{tpu_custom_call.1} parent=31 // pred_fallthru
          _
        %s235 = sand.u32 %s50, 1
        %s236 = scalar_lea.sflag [#allocation4], %s235
        %s237 = sand.u32 %s50, 1
        %s238 = smul.addr %s237, 384
        %s239 = scalar_lea.vmem [#allocation3], %s238
        %p240 = pneg %p63
        %p241 = pneg %p60
        %p242 = pneg %p91
        %p243 = pneg %p88
        %s244 = smul.u32 2, %s27
        %p245 = scmp.lt.s32.totalorder %s244, 1
        %s246 = scalar_select %p245, %s244, 1
        %s247 = scalar_lea.vmem %s2, %s246
        %p248 = pneg %p117
        %p249 = pneg %p114
        %p250 = pneg %p145
        %p251 = pneg %p142
        %s252 = sand.u32 %s132, 1
        %s253 = scalar_lea.sflag [#allocation5], %s252
        %s254 = sand.u32 %s132, 1
        %s255 = smul.addr %s254, 128
        %s256 = scalar_lea.vmem [#allocation8], %s255
        %s257 = smul.u32 16, %s26
        %s258 = smul.u32 6, %s28
        %s259 = smul.u32 96, %s28
        %s260 = smul.u32 2, %s27
        %s261 = smul.u32 2, %s27
        %p262 = scmp.lt.s32.totalorder %s261, 1
        %s263 = scalar_select %p262, %s261, 1
        %s264 = scalar_lea.vmem %s2, %s263
        %s265 = smul.u32 2, %s27
        %s266 = smul.u32 16, %s26
        %s267 = smul.u32 2, %s27
        %p268 = scmp.eq.s32.totalorder %s28, 0
        // Predicated region
        $region41: #{tpu_custom_call.1} parent=31 // pred_check
          %p269 = pneg %p268
        $region42: #{tpu_custom_call.1} parent=31 // pred_check_branch
          %271 = sbr.rel (%p269) target = $region44
        $region43: #{tpu_custom_call.1} parent=31 // pred_region
          %272 = vst [vmem:[#allocation2] sm:$0xff] 0.0
          %273 = vst [vmem:[#allocation2 + $0x8] sm:$0xff] 0.0
          %274 = vst [vmem:[#allocation2 + $0x10] sm:$0xff] 0.0
          %275 = vst [vmem:[#allocation2 + $0x18] sm:$0xff] 0.0
          %276 = vst [vmem:[#allocation2 + $0x20] sm:$0xff] 0.0
          %277 = vst [vmem:[#allocation2 + $0x28] sm:$0xff] 0.0
          %278 = vst [vmem:[#allocation2 + $0x30] sm:$0xff] 0.0
          %279 = vst [vmem:[#allocation2 + $0x38] sm:$0xff] 0.0
          %280 = vst [vmem:[#allocation2 + $0x40] sm:$0xff] 0.0
          %281 = vst [vmem:[#allocation2 + $0x48] sm:$0xff] 0.0
          %282 = vst [vmem:[#allocation2 + $0x50] sm:$0xff] 0.0
          %283 = vst [vmem:[#allocation2 + $0x58] sm:$0xff] 0.0
          %284 = vst [vmem:[#allocation2 + $0x60] sm:$0xff] 0.0
          %285 = vst [vmem:[#allocation2 + $0x68] sm:$0xff] 0.0
          %286 = vst [vmem:[#allocation2 + $0x70] sm:$0xff] 0.0
          %287 = vst [vmem:[#allocation2 + $0x78] sm:$0xff] 0.0
          %288 = vst [vmem:[#allocation2 + $0x80] sm:$0xff] 0.0
          %289 = vst [vmem:[#allocation2 + $0x88] sm:$0xff] 0.0
          %290 = vst [vmem:[#allocation2 + $0x90] sm:$0xff] 0.0
          %291 = vst [vmem:[#allocation2 + $0x98] sm:$0xff] 0.0
          %292 = vst [vmem:[#allocation2 + $0xa0] sm:$0xff] 0.0
          %293 = vst [vmem:[#allocation2 + $0xa8] sm:$0xff] 0.0
          %294 = vst [vmem:[#allocation2 + $0xb0] sm:$0xff] 0.0
          %295 = vst [vmem:[#allocation2 + $0xb8] sm:$0xff] 0.0
          %296 = vst [vmem:[#allocation2 + $0xc0] sm:$0xff] 0.0
          %297 = vst [vmem:[#allocation2 + $0xc8] sm:$0xff] 0.0
          %298 = vst [vmem:[#allocation2 + $0xd0] sm:$0xff] 0.0
          %299 = vst [vmem:[#allocation2 + $0xd8] sm:$0xff] 0.0
          %300 = vst [vmem:[#allocation2 + $0xe0] sm:$0xff] 0.0
          %301 = vst [vmem:[#allocation2 + $0xe8] sm:$0xff] 0.0
          %302 = vst [vmem:[#allocation2 + $0xf0] sm:$0xff] 0.0
          %303 = vst [vmem:[#allocation2 + $0xf8] sm:$0xff] 0.0
        $region44: #{tpu_custom_call.1} parent=31 // pred_fallthru
          _
        %v304 = vld [vmem:[#allocation2] sm:$0xff]
        %v305 = vld [vmem:[#allocation2 + $0x8] sm:$0xff]
        %v306 = vld [vmem:[#allocation2 + $0x10] sm:$0xff]
        %v307 = vld [vmem:[#allocation2 + $0x18] sm:$0xff]
        %v308 = vld [vmem:[#allocation2 + $0x20] sm:$0xff]
        %v309 = vld [vmem:[#allocation2 + $0x28] sm:$0xff]
        %v310 = vld [vmem:[#allocation2 + $0x30] sm:$0xff]
        %v311 = vld [vmem:[#allocation2 + $0x38] sm:$0xff]
        %v312 = vld [vmem:[#allocation2 + $0x40] sm:$0xff]
        %v313 = vld [vmem:[#allocation2 + $0x48] sm:$0xff]
        %v314 = vld [vmem:[#allocation2 + $0x50] sm:$0xff]
        %v315 = vld [vmem:[#allocation2 + $0x58] sm:$0xff]
        %v316 = vld [vmem:[#allocation2 + $0x60] sm:$0xff]
        %v317 = vld [vmem:[#allocation2 + $0x68] sm:$0xff]
        %v318 = vld [vmem:[#allocation2 + $0x70] sm:$0xff]
        %v319 = vld [vmem:[#allocation2 + $0x78] sm:$0xff]
        %v320 = vld [vmem:[#allocation2 + $0x80] sm:$0xff]
        %v321 = vld [vmem:[#allocation2 + $0x88] sm:$0xff]
        %v322 = vld [vmem:[#allocation2 + $0x90] sm:$0xff]
        %v323 = vld [vmem:[#allocation2 + $0x98] sm:$0xff]
        %v324 = vld [vmem:[#allocation2 + $0xa0] sm:$0xff]
        %v325 = vld [vmem:[#allocation2 + $0xa8] sm:$0xff]
        %v326 = vld [vmem:[#allocation2 + $0xb0] sm:$0xff]
        %v327 = vld [vmem:[#allocation2 + $0xb8] sm:$0xff]
        %v328 = vld [vmem:[#allocation2 + $0xc0] sm:$0xff]
        %v329 = vld [vmem:[#allocation2 + $0xc8] sm:$0xff]
        %v330 = vld [vmem:[#allocation2 + $0xd0] sm:$0xff]
        %v331 = vld [vmem:[#allocation2 + $0xd8] sm:$0xff]
        %v332 = vld [vmem:[#allocation2 + $0xe0] sm:$0xff]
        %v333 = vld [vmem:[#allocation2 + $0xe8] sm:$0xff]
        %v334 = vld [vmem:[#allocation2 + $0xf0] sm:$0xff]
        %v335 = vld [vmem:[#allocation2 + $0xf8] sm:$0xff]
        %v336 = vld [vmem:[%s226] sm:$0xff]
        %v337 = vld [vmem:[%s226 + $0x8] sm:$0xff]
        %v338 = vld [vmem:[%s226 + $0x10] sm:$0xff]
        %v339 = vld [vmem:[%s226 + $0x18] sm:$0xff]
        %v340 = vld [vmem:[%s226 + $0x20] sm:$0xff]
        %v341 = vld [vmem:[%s226 + $0x28] sm:$0xff]
        %v342 = vld [vmem:[%s226 + $0x30] sm:$0xff]
        %v343 = vld [vmem:[%s226 + $0x38] sm:$0xff]
        %v344 = vld [vmem:[%s226 + $0x40] sm:$0xff]
        %v345 = vld [vmem:[%s226 + $0x48] sm:$0xff]
        %v346 = vld [vmem:[%s226 + $0x50] sm:$0xff]
        %v347 = vld [vmem:[%s226 + $0x58] sm:$0xff]
        %v348 = vld [vmem:[%s226 + $0x60] sm:$0xff]
        %v349 = vld [vmem:[%s226 + $0x68] sm:$0xff]
        %v350 = vld [vmem:[%s226 + $0x70] sm:$0xff]
        %v351 = vld [vmem:[%s226 + $0x78] sm:$0xff]
        %v352 = vld [vmem:[%s226 + $0x80] sm:$0xff]
        %v353 = vld [vmem:[%s226 + $0x88] sm:$0xff]
        %v354 = vld [vmem:[%s226 + $0x90] sm:$0xff]
        %v355 = vld [vmem:[%s226 + $0x98] sm:$0xff]
        %v356 = vld [vmem:[%s226 + $0xa0] sm:$0xff]
        %v357 = vld [vmem:[%s226 + $0xa8] sm:$0xff]
        %v358 = vld [vmem:[%s226 + $0xb0] sm:$0xff]
        %v359 = vld [vmem:[%s226 + $0xb8] sm:$0xff]
        %v360 = vld [vmem:[%s226 + $0xc0] sm:$0xff]
        %v361 = vld [vmem:[%s226 + $0xc8] sm:$0xff]
        %v362 = vld [vmem:[%s226 + $0xd0] sm:$0xff]
        %v363 = vld [vmem:[%s226 + $0xd8] sm:$0xff]
        %v364 = vld [vmem:[%s226 + $0xe0] sm:$0xff]
        %v365 = vld [vmem:[%s226 + $0xe8] sm:$0xff]
        %v366 = vld [vmem:[%s226 + $0xf0] sm:$0xff]
        %v367 = vld [vmem:[%s226 + $0xf8] sm:$0xff]
        %v368 = vld [vmem:[%s226 + $0x100] sm:$0xff]
        %v369 = vld [vmem:[%s226 + $0x108] sm:$0xff]
        %v370 = vld [vmem:[%s226 + $0x110] sm:$0xff]
        %v371 = vld [vmem:[%s226 + $0x118] sm:$0xff]
        %v372 = vld [vmem:[%s226 + $0x120] sm:$0xff]
        %v373 = vld [vmem:[%s226 + $0x128] sm:$0xff]
        %v374 = vld [vmem:[%s226 + $0x130] sm:$0xff]
        %v375 = vld [vmem:[%s226 + $0x138] sm:$0xff]
        %v376 = vld [vmem:[%s226 + $0x140] sm:$0xff]
        %v377 = vld [vmem:[%s226 + $0x148] sm:$0xff]
        %v378 = vld [vmem:[%s226 + $0x150] sm:$0xff]
        %v379 = vld [vmem:[%s226 + $0x158] sm:$0xff]
        %v380 = vld [vmem:[%s226 + $0x160] sm:$0xff]
        %v381 = vld [vmem:[%s226 + $0x168] sm:$0xff]
        %v382 = vld [vmem:[%s226 + $0x170] sm:$0xff]
        %v383 = vld [vmem:[%s226 + $0x178] sm:$0xff]
        %v384 = vld [vmem:[#allocation6] sm:$0xff]
        %v385 = vld [vmem:[#allocation6 + $0x8] sm:$0xff]
        %v386 = vld [vmem:[#allocation6 + $0x10] sm:$0xff]
        %v387 = vld [vmem:[#allocation6 + $0x18] sm:$0xff]
        %v388 = vld [vmem:[#allocation6 + $0x20] sm:$0xff]
        %v389 = vld [vmem:[#allocation6 + $0x28] sm:$0xff]
        %v390 = vld [vmem:[#allocation6 + $0x30] sm:$0xff]
        %v391 = vld [vmem:[#allocation6 + $0x38] sm:$0xff]
        %v392 = vld [vmem:[#allocation6 + $0x40] sm:$0xff]
        %v393 = vld [vmem:[#allocation6 + $0x48] sm:$0xff]
        %v394 = vld [vmem:[#allocation6 + $0x50] sm:$0xff]
        %v395 = vld [vmem:[#allocation6 + $0x58] sm:$0xff]
        %v396 = vld [vmem:[#allocation6 + $0x60] sm:$0xff]
        %v397 = vld [vmem:[#allocation6 + $0x68] sm:$0xff]
        %v398 = vld [vmem:[#allocation6 + $0x70] sm:$0xff]
        %v399 = vld [vmem:[#allocation6 + $0x78] sm:$0xff]
        %v400 = vld [vmem:[#allocation6 + $0x80] sm:$0xff]
        %v401 = vld [vmem:[#allocation6 + $0x88] sm:$0xff]
        %v402 = vld [vmem:[#allocation6 + $0x90] sm:$0xff]
        %v403 = vld [vmem:[#allocation6 + $0x98] sm:$0xff]
        %v404 = vld [vmem:[#allocation6 + $0xa0] sm:$0xff]
        %v405 = vld [vmem:[#allocation6 + $0xa8] sm:$0xff]
        %v406 = vld [vmem:[#allocation6 + $0xb0] sm:$0xff]
        %v407 = vld [vmem:[#allocation6 + $0xb8] sm:$0xff]
        %v408 = vld [vmem:[#allocation6 + $0xc0] sm:$0xff]
        %v409 = vld [vmem:[#allocation6 + $0xc8] sm:$0xff]
        %v410 = vld [vmem:[#allocation6 + $0xd0] sm:$0xff]
        %v411 = vld [vmem:[#allocation6 + $0xd8] sm:$0xff]
        %v412 = vld [vmem:[#allocation6 + $0xe0] sm:$0xff]
        %v413 = vld [vmem:[#allocation6 + $0xe8] sm:$0xff]
        %v414 = vld [vmem:[#allocation6 + $0xf0] sm:$0xff]
        %v415 = vld [vmem:[#allocation6 + $0xf8] sm:$0xff]
        %v416 = vld [vmem:[#allocation6 + $0x100] sm:$0xff]
        %v417 = vld [vmem:[#allocation6 + $0x108] sm:$0xff]
        %v418 = vld [vmem:[#allocation6 + $0x110] sm:$0xff]
        %v419 = vld [vmem:[#allocation6 + $0x118] sm:$0xff]
        %v420 = vld [vmem:[#allocation6 + $0x120] sm:$0xff]
        %v421 = vld [vmem:[#allocation6 + $0x128] sm:$0xff]
        %v422 = vld [vmem:[#allocation6 + $0x130] sm:$0xff]
        %v423 = vld [vmem:[#allocation6 + $0x138] sm:$0xff]
        %v424 = vld [vmem:[#allocation6 + $0x140] sm:$0xff]
        %v425 = vld [vmem:[#allocation6 + $0x148] sm:$0xff]
        %v426 = vld [vmem:[#allocation6 + $0x150] sm:$0xff]
        %v427 = vld [vmem:[#allocation6 + $0x158] sm:$0xff]
        %v428 = vld [vmem:[#allocation6 + $0x160] sm:$0xff]
        %v429 = vld [vmem:[#allocation6 + $0x168] sm:$0xff]
        %v430 = vld [vmem:[#allocation6 + $0x170] sm:$0xff]
        %v431 = vld [vmem:[#allocation6 + $0x178] sm:$0xff]
        %v432 = vld [vmem:[#allocation6 + $0x180] sm:$0xff]
        %v433 = vld [vmem:[#allocation6 + $0x188] sm:$0xff]
        %v434 = vld [vmem:[#allocation6 + $0x190] sm:$0xff]
        %v435 = vld [vmem:[#allocation6 + $0x198] sm:$0xff]
        %v436 = vld [vmem:[#allocation6 + $0x1a0] sm:$0xff]
        %v437 = vld [vmem:[#allocation6 + $0x1a8] sm:$0xff]
        %v438 = vld [vmem:[#allocation6 + $0x1b0] sm:$0xff]
        %v439 = vld [vmem:[#allocation6 + $0x1b8] sm:$0xff]
        %v440 = vld [vmem:[#allocation6 + $0x1c0] sm:$0xff]
        %v441 = vld [vmem:[#allocation6 + $0x1c8] sm:$0xff]
        %v442 = vld [vmem:[#allocation6 + $0x1d0] sm:$0xff]
        %v443 = vld [vmem:[#allocation6 + $0x1d8] sm:$0xff]
        %v444 = vld [vmem:[#allocation6 + $0x1e0] sm:$0xff]
        %v445 = vld [vmem:[#allocation6 + $0x1e8] sm:$0xff]
        %v446 = vld [vmem:[#allocation6 + $0x1f0] sm:$0xff]
        %v447 = vld [vmem:[#allocation6 + $0x1f8] sm:$0xff]
        %v448 = vld [vmem:[#allocation6 + $0x200] sm:$0xff]
        %v449 = vld [vmem:[#allocation6 + $0x208] sm:$0xff]
        %v450 = vld [vmem:[#allocation6 + $0x210] sm:$0xff]
        %v451 = vld [vmem:[#allocation6 + $0x218] sm:$0xff]
        %v452 = vld [vmem:[#allocation6 + $0x220] sm:$0xff]
        %v453 = vld [vmem:[#allocation6 + $0x228] sm:$0xff]
        %v454 = vld [vmem:[#allocation6 + $0x230] sm:$0xff]
        %v455 = vld [vmem:[#allocation6 + $0x238] sm:$0xff]
        %v456 = vld [vmem:[#allocation6 + $0x240] sm:$0xff]
        %v457 = vld [vmem:[#allocation6 + $0x248] sm:$0xff]
        %v458 = vld [vmem:[#allocation6 + $0x250] sm:$0xff]
        %v459 = vld [vmem:[#allocation6 + $0x258] sm:$0xff]
        %v460 = vld [vmem:[#allocation6 + $0x260] sm:$0xff]
        %v461 = vld [vmem:[#allocation6 + $0x268] sm:$0xff]
        %v462 = vld [vmem:[#allocation6 + $0x270] sm:$0xff]
        %v463 = vld [vmem:[#allocation6 + $0x278] sm:$0xff]
        %v464 = vld [vmem:[#allocation6 + $0x280] sm:$0xff]
        %v465 = vld [vmem:[#allocation6 + $0x288] sm:$0xff]
        %v466 = vld [vmem:[#allocation6 + $0x290] sm:$0xff]
        %v467 = vld [vmem:[#allocation6 + $0x298] sm:$0xff]
        %v468 = vld [vmem:[#allocation6 + $0x2a0] sm:$0xff]
        %v469 = vld [vmem:[#allocation6 + $0x2a8] sm:$0xff]
        %v470 = vld [vmem:[#allocation6 + $0x2b0] sm:$0xff]
        %v471 = vld [vmem:[#allocation6 + $0x2b8] sm:$0xff]
        %v472 = vld [vmem:[#allocation6 + $0x2c0] sm:$0xff]
        %v473 = vld [vmem:[#allocation6 + $0x2c8] sm:$0xff]
        %v474 = vld [vmem:[#allocation6 + $0x2d0] sm:$0xff]
        %v475 = vld [vmem:[#allocation6 + $0x2d8] sm:$0xff]
        %v476 = vld [vmem:[#allocation6 + $0x2e0] sm:$0xff]
        %v477 = vld [vmem:[#allocation6 + $0x2e8] sm:$0xff]
        %v478 = vld [vmem:[#allocation6 + $0x2f0] sm:$0xff]
        %v479 = vld [vmem:[#allocation6 + $0x2f8] sm:$0xff]
        %v528 = vunpack.c.l.b16 %v336
        %v529 = vunpack.c.h.b16 %v336
        %v530 = vunpack.c.l.b16 %v337
        %v531 = vunpack.c.h.b16 %v337
        %v532 = vunpack.c.l.b16 %v338
        %v533 = vunpack.c.h.b16 %v338
        %v534 = vunpack.c.l.b16 %v339
        %v535 = vunpack.c.h.b16 %v339
        %v536 = vunpack.c.l.b16 %v340
        %v537 = vunpack.c.h.b16 %v340
        %v538 = vunpack.c.l.b16 %v341
        %v539 = vunpack.c.h.b16 %v341
        %v540 = vunpack.c.l.b16 %v342
        %v541 = vunpack.c.h.b16 %v342
        %v542 = vunpack.c.l.b16 %v343
        %v543 = vunpack.c.h.b16 %v343
        %v544 = vunpack.c.l.b16 %v344
        %v545 = vunpack.c.h.b16 %v344
        %v546 = vunpack.c.l.b16 %v345
        %v547 = vunpack.c.h.b16 %v345
        %v548 = vunpack.c.l.b16 %v346
        %v549 = vunpack.c.h.b16 %v346
        %v550 = vunpack.c.l.b16 %v347
        %v551 = vunpack.c.h.b16 %v347
        %v552 = vunpack.c.l.b16 %v348
        %v553 = vunpack.c.h.b16 %v348
        %v554 = vunpack.c.l.b16 %v349
        %v555 = vunpack.c.h.b16 %v349
        %v556 = vunpack.c.l.b16 %v350
        %v557 = vunpack.c.h.b16 %v350
        %v558 = vunpack.c.l.b16 %v351
        %v559 = vunpack.c.h.b16 %v351
        %v560 = vunpack.c.l.b16 %v352
        %v561 = vunpack.c.h.b16 %v352
        %v562 = vunpack.c.l.b16 %v353
        %v563 = vunpack.c.h.b16 %v353
        %v564 = vunpack.c.l.b16 %v354
        %v565 = vunpack.c.h.b16 %v354
        %v566 = vunpack.c.l.b16 %v355
        %v567 = vunpack.c.h.b16 %v355
        %v568 = vunpack.c.l.b16 %v356
        %v569 = vunpack.c.h.b16 %v356
        %v570 = vunpack.c.l.b16 %v357
        %v571 = vunpack.c.h.b16 %v357
        %v572 = vunpack.c.l.b16 %v358
        %v573 = vunpack.c.h.b16 %v358
        %v574 = vunpack.c.l.b16 %v359
        %v575 = vunpack.c.h.b16 %v359
        %v576 = vunpack.c.l.b16 %v360
        %v577 = vunpack.c.h.b16 %v360
        %v578 = vunpack.c.l.b16 %v361
        %v579 = vunpack.c.h.b16 %v361
        %v580 = vunpack.c.l.b16 %v362
        %v581 = vunpack.c.h.b16 %v362
        %v582 = vunpack.c.l.b16 %v363
        %v583 = vunpack.c.h.b16 %v363
        %v584 = vunpack.c.l.b16 %v364
        %v585 = vunpack.c.h.b16 %v364
        %v586 = vunpack.c.l.b16 %v365
        %v587 = vunpack.c.h.b16 %v365
        %v588 = vunpack.c.l.b16 %v366
        %v589 = vunpack.c.h.b16 %v366
        %v590 = vunpack.c.l.b16 %v367
        %v591 = vunpack.c.h.b16 %v367
        %v592 = vunpack.c.l.b16 %v368
        %v593 = vunpack.c.h.b16 %v368
        %v594 = vunpack.c.l.b16 %v369
        %v595 = vunpack.c.h.b16 %v369
        %v596 = vunpack.c.l.b16 %v370
        %v597 = vunpack.c.h.b16 %v370
        %v598 = vunpack.c.l.b16 %v371
        %v599 = vunpack.c.h.b16 %v371
        %v600 = vunpack.c.l.b16 %v372
        %v601 = vunpack.c.h.b16 %v372
        %v602 = vunpack.c.l.b16 %v373
        %v603 = vunpack.c.h.b16 %v373
        %v604 = vunpack.c.l.b16 %v374
        %v605 = vunpack.c.h.b16 %v374
        %v606 = vunpack.c.l.b16 %v375
        %v607 = vunpack.c.h.b16 %v375
        %v608 = vunpack.c.l.b16 %v376
        %v609 = vunpack.c.h.b16 %v376
        %v610 = vunpack.c.l.b16 %v377
        %v611 = vunpack.c.h.b16 %v377
        %v612 = vunpack.c.l.b16 %v378
        %v613 = vunpack.c.h.b16 %v378
        %v614 = vunpack.c.l.b16 %v379
        %v615 = vunpack.c.h.b16 %v379
        %v616 = vunpack.c.l.b16 %v380
        %v617 = vunpack.c.h.b16 %v380
        %v618 = vunpack.c.l.b16 %v381
        %v619 = vunpack.c.h.b16 %v381
        %v620 = vunpack.c.l.b16 %v382
        %v621 = vunpack.c.h.b16 %v382
        %v622 = vunpack.c.l.b16 %v383
        %v623 = vunpack.c.h.b16 %v383
        %v624 = vpack.c.b16 %v534, %v528
        %v625 = vpack.c.b16 %v535, %v529
        %v626 = vpack.c.b16 %v536, %v530
        %v627 = vpack.c.b16 %v537, %v531
        %v628 = vpack.c.b16 %v538, %v532
        %v629 = vpack.c.b16 %v539, %v533
        %v630 = vpack.c.b16 %v546, %v540
        %v631 = vpack.c.b16 %v547, %v541
        %v632 = vpack.c.b16 %v548, %v542
        %v633 = vpack.c.b16 %v549, %v543
        %v634 = vpack.c.b16 %v550, %v544
        %v635 = vpack.c.b16 %v551, %v545
        %v636 = vpack.c.b16 %v558, %v552
        %v637 = vpack.c.b16 %v559, %v553
        %v638 = vpack.c.b16 %v560, %v554
        %v639 = vpack.c.b16 %v561, %v555
        %v640 = vpack.c.b16 %v562, %v556
        %v641 = vpack.c.b16 %v563, %v557
        %v642 = vpack.c.b16 %v570, %v564
        %v643 = vpack.c.b16 %v571, %v565
        %v644 = vpack.c.b16 %v572, %v566
        %v645 = vpack.c.b16 %v573, %v567
        %v646 = vpack.c.b16 %v574, %v568
        %v647 = vpack.c.b16 %v575, %v569
        %v648 = vpack.c.b16 %v582, %v576
        %v649 = vpack.c.b16 %v583, %v577
        %v650 = vpack.c.b16 %v584, %v578
        %v651 = vpack.c.b16 %v585, %v579
        %v652 = vpack.c.b16 %v586, %v580
        %v653 = vpack.c.b16 %v587, %v581
        %v654 = vpack.c.b16 %v594, %v588
        %v655 = vpack.c.b16 %v595, %v589
        %v656 = vpack.c.b16 %v596, %v590
        %v657 = vpack.c.b16 %v597, %v591
        %v658 = vpack.c.b16 %v598, %v592
        %v659 = vpack.c.b16 %v599, %v593
        %v660 = vpack.c.b16 %v606, %v600
        %v661 = vpack.c.b16 %v607, %v601
        %v662 = vpack.c.b16 %v608, %v602
        %v663 = vpack.c.b16 %v609, %v603
        %v664 = vpack.c.b16 %v610, %v604
        %v665 = vpack.c.b16 %v611, %v605
        %v666 = vpack.c.b16 %v618, %v612
        %v667 = vpack.c.b16 %v619, %v613
        %v668 = vpack.c.b16 %v620, %v614
        %v669 = vpack.c.b16 %v621, %v615
        %v670 = vpack.c.b16 %v622, %v616
        %v671 = vpack.c.b16 %v623, %v617
        %v816 = vunpack.c.l.b16 %v384
        %v817 = vunpack.c.h.b16 %v384
        %v818 = vunpack.c.l.b16 %v385
        %v819 = vunpack.c.h.b16 %v385
        %v820 = vunpack.c.l.b16 %v386
        %v821 = vunpack.c.h.b16 %v386
        %v822 = vunpack.c.l.b16 %v387
        %v823 = vunpack.c.h.b16 %v387
        %v824 = vunpack.c.l.b16 %v388
        %v825 = vunpack.c.h.b16 %v388
        %v826 = vunpack.c.l.b16 %v389
        %v827 = vunpack.c.h.b16 %v389
        %v828 = vunpack.c.l.b16 %v390
        %v829 = vunpack.c.h.b16 %v390
        %v830 = vunpack.c.l.b16 %v391
        %v831 = vunpack.c.h.b16 %v391
        %v832 = vunpack.c.l.b16 %v392
        %v833 = vunpack.c.h.b16 %v392
        %v834 = vunpack.c.l.b16 %v393
        %v835 = vunpack.c.h.b16 %v393
        %v836 = vunpack.c.l.b16 %v394
        %v837 = vunpack.c.h.b16 %v394
        %v838 = vunpack.c.l.b16 %v395
        %v839 = vunpack.c.h.b16 %v395
        %v840 = vunpack.c.l.b16 %v396
        %v841 = vunpack.c.h.b16 %v396
        %v842 = vunpack.c.l.b16 %v397
        %v843 = vunpack.c.h.b16 %v397
        %v844 = vunpack.c.l.b16 %v398
        %v845 = vunpack.c.h.b16 %v398
        %v846 = vunpack.c.l.b16 %v399
        %v847 = vunpack.c.h.b16 %v399
        %v848 = vunpack.c.l.b16 %v400
        %v849 = vunpack.c.h.b16 %v400
        %v850 = vunpack.c.l.b16 %v401
        %v851 = vunpack.c.h.b16 %v401
        %v852 = vunpack.c.l.b16 %v402
        %v853 = vunpack.c.h.b16 %v402
        %v854 = vunpack.c.l.b16 %v403
        %v855 = vunpack.c.h.b16 %v403
        %v856 = vunpack.c.l.b16 %v404
        %v857 = vunpack.c.h.b16 %v404
        %v858 = vunpack.c.l.b16 %v405
        %v859 = vunpack.c.h.b16 %v405
        %v860 = vunpack.c.l.b16 %v406
        %v861 = vunpack.c.h.b16 %v406
        %v862 = vunpack.c.l.b16 %v407
        %v863 = vunpack.c.h.b16 %v407
        %v864 = vunpack.c.l.b16 %v408
        %v865 = vunpack.c.h.b16 %v408
        %v866 = vunpack.c.l.b16 %v409
        %v867 = vunpack.c.h.b16 %v409
        %v868 = vunpack.c.l.b16 %v410
        %v869 = vunpack.c.h.b16 %v410
        %v870 = vunpack.c.l.b16 %v411
        %v871 = vunpack.c.h.b16 %v411
        %v872 = vunpack.c.l.b16 %v412
        %v873 = vunpack.c.h.b16 %v412
        %v874 = vunpack.c.l.b16 %v413
        %v875 = vunpack.c.h.b16 %v413
        %v876 = vunpack.c.l.b16 %v414
        %v877 = vunpack.c.h.b16 %v414
        %v878 = vunpack.c.l.b16 %v415
        %v879 = vunpack.c.h.b16 %v415
        %v880 = vunpack.c.l.b16 %v416
        %v881 = vunpack.c.h.b16 %v416
        %v882 = vunpack.c.l.b16 %v417
        %v883 = vunpack.c.h.b16 %v417
        %v884 = vunpack.c.l.b16 %v418
        %v885 = vunpack.c.h.b16 %v418
        %v886 = vunpack.c.l.b16 %v419
        %v887 = vunpack.c.h.b16 %v419
        %v888 = vunpack.c.l.b16 %v420
        %v889 = vunpack.c.h.b16 %v420
        %v890 = vunpack.c.l.b16 %v421
        %v891 = vunpack.c.h.b16 %v421
        %v892 = vunpack.c.l.b16 %v422
        %v893 = vunpack.c.h.b16 %v422
        %v894 = vunpack.c.l.b16 %v423
        %v895 = vunpack.c.h.b16 %v423
        %v896 = vunpack.c.l.b16 %v424
        %v897 = vunpack.c.h.b16 %v424
        %v898 = vunpack.c.l.b16 %v425
        %v899 = vunpack.c.h.b16 %v425
        %v900 = vunpack.c.l.b16 %v426
        %v901 = vunpack.c.h.b16 %v426
        %v902 = vunpack.c.l.b16 %v427
        %v903 = vunpack.c.h.b16 %v427
        %v904 = vunpack.c.l.b16 %v428
        %v905 = vunpack.c.h.b16 %v428
        %v906 = vunpack.c.l.b16 %v429
        %v907 = vunpack.c.h.b16 %v429
        %v908 = vunpack.c.l.b16 %v430
        %v909 = vunpack.c.h.b16 %v430
        %v910 = vunpack.c.l.b16 %v431
        %v911 = vunpack.c.h.b16 %v431
        %v912 = vunpack.c.l.b16 %v432
        %v913 = vunpack.c.h.b16 %v432
        %v914 = vunpack.c.l.b16 %v433
        %v915 = vunpack.c.h.b16 %v433
        %v916 = vunpack.c.l.b16 %v434
        %v917 = vunpack.c.h.b16 %v434
        %v918 = vunpack.c.l.b16 %v435
        %v919 = vunpack.c.h.b16 %v435
        %v920 = vunpack.c.l.b16 %v436
        %v921 = vunpack.c.h.b16 %v436
        %v922 = vunpack.c.l.b16 %v437
        %v923 = vunpack.c.h.b16 %v437
        %v924 = vunpack.c.l.b16 %v438
        %v925 = vunpack.c.h.b16 %v438
        %v926 = vunpack.c.l.b16 %v439
        %v927 = vunpack.c.h.b16 %v439
        %v928 = vunpack.c.l.b16 %v440
        %v929 = vunpack.c.h.b16 %v440
        %v930 = vunpack.c.l.b16 %v441
        %v931 = vunpack.c.h.b16 %v441
        %v932 = vunpack.c.l.b16 %v442
        %v933 = vunpack.c.h.b16 %v442
        %v934 = vunpack.c.l.b16 %v443
        %v935 = vunpack.c.h.b16 %v443
        %v936 = vunpack.c.l.b16 %v444
        %v937 = vunpack.c.h.b16 %v444
        %v938 = vunpack.c.l.b16 %v445
        %v939 = vunpack.c.h.b16 %v445
        %v940 = vunpack.c.l.b16 %v446
        %v941 = vunpack.c.h.b16 %v446
        %v942 = vunpack.c.l.b16 %v447
        %v943 = vunpack.c.h.b16 %v447
        %v944 = vunpack.c.l.b16 %v448
        %v945 = vunpack.c.h.b16 %v448
        %v946 = vunpack.c.l.b16 %v449
        %v947 = vunpack.c.h.b16 %v449
        %v948 = vunpack.c.l.b16 %v450
        %v949 = vunpack.c.h.b16 %v450
        %v950 = vunpack.c.l.b16 %v451
        %v951 = vunpack.c.h.b16 %v451
        %v952 = vunpack.c.l.b16 %v452
        %v953 = vunpack.c.h.b16 %v452
        %v954 = vunpack.c.l.b16 %v453
        %v955 = vunpack.c.h.b16 %v453
        %v956 = vunpack.c.l.b16 %v454
        %v957 = vunpack.c.h.b16 %v454
        %v958 = vunpack.c.l.b16 %v455
        %v959 = vunpack.c.h.b16 %v455
        %v960 = vunpack.c.l.b16 %v456
        %v961 = vunpack.c.h.b16 %v456
        %v962 = vunpack.c.l.b16 %v457
        %v963 = vunpack.c.h.b16 %v457
        %v964 = vunpack.c.l.b16 %v458
        %v965 = vunpack.c.h.b16 %v458
        %v966 = vunpack.c.l.b16 %v459
        %v967 = vunpack.c.h.b16 %v459
        %v968 = vunpack.c.l.b16 %v460
        %v969 = vunpack.c.h.b16 %v460
        %v970 = vunpack.c.l.b16 %v461
        %v971 = vunpack.c.h.b16 %v461
        %v972 = vunpack.c.l.b16 %v462
        %v973 = vunpack.c.h.b16 %v462
        %v974 = vunpack.c.l.b16 %v463
        %v975 = vunpack.c.h.b16 %v463
        %v976 = vunpack.c.l.b16 %v464
        %v977 = vunpack.c.h.b16 %v464
        %v978 = vunpack.c.l.b16 %v465
        %v979 = vunpack.c.h.b16 %v465
        %v980 = vunpack.c.l.b16 %v466
        %v981 = vunpack.c.h.b16 %v466
        %v982 = vunpack.c.l.b16 %v467
        %v983 = vunpack.c.h.b16 %v467
        %v984 = vunpack.c.l.b16 %v468
        %v985 = vunpack.c.h.b16 %v468
        %v986 = vunpack.c.l.b16 %v469
        %v987 = vunpack.c.h.b16 %v469
        %v988 = vunpack.c.l.b16 %v470
        %v989 = vunpack.c.h.b16 %v470
        %v990 = vunpack.c.l.b16 %v471
        %v991 = vunpack.c.h.b16 %v471
        %v992 = vunpack.c.l.b16 %v472
        %v993 = vunpack.c.h.b16 %v472
        %v994 = vunpack.c.l.b16 %v473
        %v995 = vunpack.c.h.b16 %v473
        %v996 = vunpack.c.l.b16 %v474
        %v997 = vunpack.c.h.b16 %v474
        %v998 = vunpack.c.l.b16 %v475
        %v999 = vunpack.c.h.b16 %v475
        %v1000 = vunpack.c.l.b16 %v476
        %v1001 = vunpack.c.h.b16 %v476
        %v1002 = vunpack.c.l.b16 %v477
        %v1003 = vunpack.c.h.b16 %v477
        %v1004 = vunpack.c.l.b16 %v478
        %v1005 = vunpack.c.h.b16 %v478
        %v1006 = vunpack.c.l.b16 %v479
        %v1007 = vunpack.c.h.b16 %v479
        %v1008 = vpack.c.b16 %v818, %v816
        %v1009 = vpack.c.b16 %v819, %v817
        %v1010 = vpack.c.b16 %v822, %v820
        %v1011 = vpack.c.b16 %v823, %v821
        %v1012 = vpack.c.b16 %v826, %v824
        %v1013 = vpack.c.b16 %v827, %v825
        %v1014 = vpack.c.b16 %v830, %v828
        %v1015 = vpack.c.b16 %v831, %v829
        %v1016 = vpack.c.b16 %v834, %v832
        %v1017 = vpack.c.b16 %v835, %v833
        %v1018 = vpack.c.b16 %v838, %v836
        %v1019 = vpack.c.b16 %v839, %v837
        %v1020 = vpack.c.b16 %v842, %v840
        %v1021 = vpack.c.b16 %v843, %v841
        %v1022 = vpack.c.b16 %v846, %v844
        %v1023 = vpack.c.b16 %v847, %v845
        %v1024 = vpack.c.b16 %v850, %v848
        %v1025 = vpack.c.b16 %v851, %v849
        %v1026 = vpack.c.b16 %v854, %v852
        %v1027 = vpack.c.b16 %v855, %v853
        %v1028 = vpack.c.b16 %v858, %v856
        %v1029 = vpack.c.b16 %v859, %v857
        %v1030 = vpack.c.b16 %v862, %v860
        %v1031 = vpack.c.b16 %v863, %v861
        %v1032 = vpack.c.b16 %v866, %v864
        %v1033 = vpack.c.b16 %v867, %v865
        %v1034 = vpack.c.b16 %v870, %v868
        %v1035 = vpack.c.b16 %v871, %v869
        %v1036 = vpack.c.b16 %v874, %v872
        %v1037 = vpack.c.b16 %v875, %v873
        %v1038 = vpack.c.b16 %v878, %v876
        %v1039 = vpack.c.b16 %v879, %v877
        %v1040 = vpack.c.b16 %v882, %v880
        %v1041 = vpack.c.b16 %v883, %v881
        %v1042 = vpack.c.b16 %v886, %v884
        %v1043 = vpack.c.b16 %v887, %v885
        %v1044 = vpack.c.b16 %v890, %v888
        %v1045 = vpack.c.b16 %v891, %v889
        %v1046 = vpack.c.b16 %v894, %v892
        %v1047 = vpack.c.b16 %v895, %v893
        %v1048 = vpack.c.b16 %v898, %v896
        %v1049 = vpack.c.b16 %v899, %v897
        %v1050 = vpack.c.b16 %v902, %v900
        %v1051 = vpack.c.b16 %v903, %v901
        %v1052 = vpack.c.b16 %v906, %v904
        %v1053 = vpack.c.b16 %v907, %v905
        %v1054 = vpack.c.b16 %v910, %v908
        %v1055 = vpack.c.b16 %v911, %v909
        %v1056 = vpack.c.b16 %v914, %v912
        %v1057 = vpack.c.b16 %v915, %v913
        %v1058 = vpack.c.b16 %v918, %v916
        %v1059 = vpack.c.b16 %v919, %v917
        %v1060 = vpack.c.b16 %v922, %v920
        %v1061 = vpack.c.b16 %v923, %v921
        %v1062 = vpack.c.b16 %v926, %v924
        %v1063 = vpack.c.b16 %v927, %v925
        %v1064 = vpack.c.b16 %v930, %v928
        %v1065 = vpack.c.b16 %v931, %v929
        %v1066 = vpack.c.b16 %v934, %v932
        %v1067 = vpack.c.b16 %v935, %v933
        %v1068 = vpack.c.b16 %v938, %v936
        %v1069 = vpack.c.b16 %v939, %v937
        %v1070 = vpack.c.b16 %v942, %v940
        %v1071 = vpack.c.b16 %v943, %v941
        %v1072 = vpack.c.b16 %v946, %v944
        %v1073 = vpack.c.b16 %v947, %v945
        %v1074 = vpack.c.b16 %v950, %v948
        %v1075 = vpack.c.b16 %v951, %v949
        %v1076 = vpack.c.b16 %v954, %v952
        %v1077 = vpack.c.b16 %v955, %v953
        %v1078 = vpack.c.b16 %v958, %v956
        %v1079 = vpack.c.b16 %v959, %v957
        %v1080 = vpack.c.b16 %v962, %v960
        %v1081 = vpack.c.b16 %v963, %v961
        %v1082 = vpack.c.b16 %v966, %v964
        %v1083 = vpack.c.b16 %v967, %v965
        %v1084 = vpack.c.b16 %v970, %v968
        %v1085 = vpack.c.b16 %v971, %v969
        %v1086 = vpack.c.b16 %v974, %v972
        %v1087 = vpack.c.b16 %v975, %v973
        %v1088 = vpack.c.b16 %v978, %v976
        %v1089 = vpack.c.b16 %v979, %v977
        %v1090 = vpack.c.b16 %v982, %v980
        %v1091 = vpack.c.b16 %v983, %v981
        %v1092 = vpack.c.b16 %v986, %v984
        %v1093 = vpack.c.b16 %v987, %v985
        %v1094 = vpack.c.b16 %v990, %v988
        %v1095 = vpack.c.b16 %v991, %v989
        %v1096 = vpack.c.b16 %v994, %v992
        %v1097 = vpack.c.b16 %v995, %v993
        %v1098 = vpack.c.b16 %v998, %v996
        %v1099 = vpack.c.b16 %v999, %v997
        %v1100 = vpack.c.b16 %v1002, %v1000
        %v1101 = vpack.c.b16 %v1003, %v1001
        %v1102 = vpack.c.b16 %v1006, %v1004
        %v1103 = vpack.c.b16 %v1007, %v1005
        %1200 = vmatprep.subr.bf16.mxu0 %v1009
        %1201 = vmatpush1.bf16.msra.mxu0 %v1008
        %1202 = vmatprep.subr.bf16.mxu0 %v1011
        %1203 = vmatpush1.bf16.msra.mxu0 %v1010
        %1204 = vmatprep.subr.bf16.mxu0 %v1013
        %1205 = vmatpush1.bf16.msra.mxu0 %v1012
        %1206 = vmatprep.subr.bf16.mxu0 %v1015
        %1207 = vmatpush1.bf16.msra.mxu0 %v1014
        %1208 = vmatprep.subr.bf16.mxu0 %v1017
        %1209 = vmatpush1.bf16.msra.mxu0 %v1016
        %1210 = vmatprep.subr.bf16.mxu0 %v1019
        %1211 = vmatpush1.bf16.msra.mxu0 %v1018
        %1212 = vmatprep.subr.bf16.mxu0 %v1021
        %1213 = vmatpush1.bf16.msra.mxu0 %v1020
        %1214 = vmatprep.subr.bf16.mxu0 %v1023
        %1215 = vmatpush1.bf16.msra.mxu0 %v1022
        %1216 = vmatprep.subr.bf16.mxu0 %v1025
        %1217 = vmatpush1.bf16.msra.mxu0 %v1024
        %1218 = vmatprep.subr.bf16.mxu0 %v1027
        %1219 = vmatpush1.bf16.msra.mxu0 %v1026
        %1220 = vmatprep.subr.bf16.mxu0 %v1029
        %1221 = vmatpush1.bf16.msra.mxu0 %v1028
        %1222 = vmatprep.subr.bf16.mxu0 %v1031
        %1223 = vmatpush1.bf16.msra.mxu0 %v1030
        %1224 = vmatprep.subr.bf16.mxu0 %v1033
        %1225 = vmatpush1.bf16.msra.mxu0 %v1032
        %1226 = vmatprep.subr.bf16.mxu0 %v1035
        %1227 = vmatpush1.bf16.msra.mxu0 %v1034
        %1228 = vmatprep.subr.bf16.mxu0 %v1037
        %1229 = vmatpush1.bf16.msra.mxu0 %v1036
        %1230 = vmatprep.subr.bf16.mxu0 %v1039
        %1231 = vmatpush1.bf16.msra.mxu0 %v1038
        %1232 = vmatprep.mubr.bf16.mxu0 %v625
        %1233 = vmatmul.mubr.bf16.gmra.mrb[0].mxu0 %v624
        %v1234 = vpop.f32.mrb[0].mxu0
        %v1235 = vadd.f32 0.0, %v1234
        %v1236 = vpop.f32.mrb[0].mxu0
        %v1237 = vadd.f32 0.0, %v1236
        %v1238 = vpop.f32.mrb[0].mxu0
        %v1239 = vadd.f32 0.0, %v1238
        %v1240 = vpop.f32.mrb[0].mxu0
        %v1241 = vadd.f32 0.0, %v1240
        %1242 = vmatprep.mubr.bf16.mxu0 %v631
        %1243 = vmatmul.mubr.bf16.gmra.mrb[0].mxu0 %v630
        %v1244 = vpop.f32.mrb[0].mxu0
        %v1245 = vadd.f32 0.0, %v1244
        %v1246 = vpop.f32.mrb[0].mxu0
        %v1247 = vadd.f32 0.0, %v1246
        %v1248 = vpop.f32.mrb[0].mxu0
        %v1249 = vadd.f32 0.0, %v1248
        %v1250 = vpop.f32.mrb[0].mxu0
        %v1251 = vadd.f32 0.0, %v1250
        %1252 = vmatprep.mubr.bf16.mxu0 %v637
        %1253 = vmatmul.mubr.bf16.gmra.mrb[0].mxu0 %v636
        %v1254 = vpop.f32.mrb[0].mxu0
        %v1255 = vadd.f32 0.0, %v1254
        %v1256 = vpop.f32.mrb[0].mxu0
        %v1257 = vadd.f32 0.0, %v1256
        %v1258 = vpop.f32.mrb[0].mxu0
        %v1259 = vadd.f32 0.0, %v1258
        %v1260 = vpop.f32.mrb[0].mxu0
        %v1261 = vadd.f32 0.0, %v1260
        %1262 = vmatprep.mubr.bf16.mxu0 %v643
        %1263 = vmatmul.mubr.bf16.gmra.mrb[0].mxu0 %v642
        %v1264 = vpop.f32.mrb[0].mxu0
        %v1265 = vadd.f32 0.0, %v1264
        %v1266 = vpop.f32.mrb[0].mxu0
        %v1267 = vadd.f32 0.0, %v1266
        %v1268 = vpop.f32.mrb[0].mxu0
        %v1269 = vadd.f32 0.0, %v1268
        %v1270 = vpop.f32.mrb[0].mxu0
        %v1271 = vadd.f32 0.0, %v1270
        %1272 = vmatprep.mubr.bf16.mxu0 %v649
        %1273 = vmatmul.mubr.bf16.gmra.mrb[0].mxu0 %v648
        %v1274 = vpop.f32.mrb[0].mxu0
        %v1275 = vadd.f32 0.0, %v1274
        %v1276 = vpop.f32.mrb[0].mxu0
        %v1277 = vadd.f32 0.0, %v1276
        %v1278 = vpop.f32.mrb[0].mxu0
        %v1279 = vadd.f32 0.0, %v1278
        %v1280 = vpop.f32.mrb[0].mxu0
        %v1281 = vadd.f32 0.0, %v1280
        %1282 = vmatprep.mubr.bf16.mxu0 %v655
        %1283 = vmatmul.mubr.bf16.gmra.mrb[0].mxu0 %v654
        %v1284 = vpop.f32.mrb[0].mxu0
        %v1285 = vadd.f32 0.0, %v1284
        %v1286 = vpop.f32.mrb[0].mxu0
        %v1287 = vadd.f32 0.0, %v1286
        %v1288 = vpop.f32.mrb[0].mxu0
        %v1289 = vadd.f32 0.0, %v1288
        %v1290 = vpop.f32.mrb[0].mxu0
        %v1291 = vadd.f32 0.0, %v1290
        %1292 = vmatprep.mubr.bf16.mxu0 %v661
        %1293 = vmatmul.mubr.bf16.gmra.mrb[0].mxu0 %v660
        %v1294 = vpop.f32.mrb[0].mxu0
        %v1295 = vadd.f32 0.0, %v1294
        %v1296 = vpop.f32.mrb[0].mxu0
        %v1297 = vadd.f32 0.0, %v1296
        %v1298 = vpop.f32.mrb[0].mxu0
        %v1299 = vadd.f32 0.0, %v1298
        %v1300 = vpop.f32.mrb[0].mxu0
        %v1301 = vadd.f32 0.0, %v1300
        %1302 = vmatprep.mubr.bf16.mxu0 %v667
        %1303 = vmatmul.mubr.bf16.gmra.mrb[0].mxu0 %v666
        %v1304 = vpop.f32.mrb[0].mxu0
        %v1305 = vadd.f32 0.0, %v1304
        %v1306 = vpop.f32.mrb[0].mxu0
        %v1307 = vadd.f32 0.0, %v1306
        %v1308 = vpop.f32.mrb[0].mxu0
        %v1309 = vadd.f32 0.0, %v1308
        %v1310 = vpop.f32.mrb[0].mxu0
        %v1311 = vadd.f32 0.0, %v1310
        %1312 = vdwg.mxu0
        %1313 = vmatprep.subr.bf16.mxu0 %v1041
        %1314 = vmatpush1.bf16.msra.mxu0 %v1040
        %1315 = vmatprep.subr.bf16.mxu0 %v1043
        %1316 = vmatpush1.bf16.msra.mxu0 %v1042
        %1317 = vmatprep.subr.bf16.mxu0 %v1045
        %1318 = vmatpush1.bf16.msra.mxu0 %v1044
        %1319 = vmatprep.subr.bf16.mxu0 %v1047
        %1320 = vmatpush1.bf16.msra.mxu0 %v1046
        %1321 = vmatprep.subr.bf16.mxu0 %v1049
        %1322 = vmatpush1.bf16.msra.mxu0 %v1048
        %1323 = vmatprep.subr.bf16.mxu0 %v1051
        %1324 = vmatpush1.bf16.msra.mxu0 %v1050
        %1325 = vmatprep.subr.bf16.mxu0 %v1053
        %1326 = vmatpush1.bf16.msra.mxu0 %v1052
        %1327 = vmatprep.subr.bf16.mxu0 %v1055
        %1328 = vmatpush1.bf16.msra.mxu0 %v1054
        %1329 = vmatprep.subr.bf16.mxu0 %v1057
        %1330 = vmatpush1.bf16.msra.mxu0 %v1056
        %1331 = vmatprep.subr.bf16.mxu0 %v1059
        %1332 = vmatpush1.bf16.msra.mxu0 %v1058
        %1333 = vmatprep.subr.bf16.mxu0 %v1061
        %1334 = vmatpush1.bf16.msra.mxu0 %v1060
        %1335 = vmatprep.subr.bf16.mxu0 %v1063
        %1336 = vmatpush1.bf16.msra.mxu0 %v1062
        %1337 = vmatprep.subr.bf16.mxu0 %v1065
        %1338 = vmatpush1.bf16.msra.mxu0 %v1064
        %1339 = vmatprep.subr.bf16.mxu0 %v1067
        %1340 = vmatpush1.bf16.msra.mxu0 %v1066
        %1341 = vmatprep.subr.bf16.mxu0 %v1069
        %1342 = vmatpush1.bf16.msra.mxu0 %v1068
        %1343 = vmatprep.subr.bf16.mxu0 %v1071
        %1344 = vmatpush1.bf16.msra.mxu0 %v1070
        %1345 = vmatprep.mubr.bf16.mxu0 %v627
        %1346 = vmatmul.mubr.bf16.gmra.mrb[0].mxu0 %v626
        %v1347 = vpop.f32.mrb[0].mxu0
        %v1348 = vadd.f32 %v1235, %v1347
        %v1349 = vpop.f32.mrb[0].mxu0
        %v1350 = vadd.f32 %v1237, %v1349
        %v1351 = vpop.f32.mrb[0].mxu0
        %v1352 = vadd.f32 %v1239, %v1351
        %v1353 = vpop.f32.mrb[0].mxu0
        %v1354 = vadd.f32 %v1241, %v1353
        %1355 = vmatprep.mubr.bf16.mxu0 %v633
        %1356 = vmatmul.mubr.bf16.gmra.mrb[0].mxu0 %v632
        %v1357 = vpop.f32.mrb[0].mxu0
        %v1358 = vadd.f32 %v1245, %v1357
        %v1359 = vpop.f32.mrb[0].mxu0
        %v1360 = vadd.f32 %v1247, %v1359
        %v1361 = vpop.f32.mrb[0].mxu0
        %v1362 = vadd.f32 %v1249, %v1361
        %v1363 = vpop.f32.mrb[0].mxu0
        %v1364 = vadd.f32 %v1251, %v1363
        %1365 = vmatprep.mubr.bf16.mxu0 %v639
        %1366 = vmatmul.mubr.bf16.gmra.mrb[0].mxu0 %v638
        %v1367 = vpop.f32.mrb[0].mxu0
        %v1368 = vadd.f32 %v1255, %v1367
        %v1369 = vpop.f32.mrb[0].mxu0
        %v1370 = vadd.f32 %v1257, %v1369
        %v1371 = vpop.f32.mrb[0].mxu0
        %v1372 = vadd.f32 %v1259, %v1371
        %v1373 = vpop.f32.mrb[0].mxu0
        %v1374 = vadd.f32 %v1261, %v1373
        %1375 = vmatprep.mubr.bf16.mxu0 %v645
        %1376 = vmatmul.mubr.bf16.gmra.mrb[0].mxu0 %v644
        %v1377 = vpop.f32.mrb[0].mxu0
        %v1378 = vadd.f32 %v1265, %v1377
        %v1379 = vpop.f32.mrb[0].mxu0
        %v1380 = vadd.f32 %v1267, %v1379
        %v1381 = vpop.f32.mrb[0].mxu0
        %v1382 = vadd.f32 %v1269, %v1381
        %v1383 = vpop.f32.mrb[0].mxu0
        %v1384 = vadd.f32 %v1271, %v1383
        %1385 = vmatprep.mubr.bf16.mxu0 %v651
        %1386 = vmatmul.mubr.bf16.gmra.mrb[0].mxu0 %v650
        %v1387 = vpop.f32.mrb[0].mxu0
        %v1388 = vadd.f32 %v1275, %v1387
        %v1389 = vpop.f32.mrb[0].mxu0
        %v1390 = vadd.f32 %v1277, %v1389
        %v1391 = vpop.f32.mrb[0].mxu0
        %v1392 = vadd.f32 %v1279, %v1391
        %v1393 = vpop.f32.mrb[0].mxu0
        %v1394 = vadd.f32 %v1281, %v1393
        %1395 = vmatprep.mubr.bf16.mxu0 %v657
        %1396 = vmatmul.mubr.bf16.gmra.mrb[0].mxu0 %v656
        %v1397 = vpop.f32.mrb[0].mxu0
        %v1398 = vadd.f32 %v1285, %v1397
        %v1399 = vpop.f32.mrb[0].mxu0
        %v1400 = vadd.f32 %v1287, %v1399
        %v1401 = vpop.f32.mrb[0].mxu0
        %v1402 = vadd.f32 %v1289, %v1401
        %v1403 = vpop.f32.mrb[0].mxu0
        %v1404 = vadd.f32 %v1291, %v1403
        %1405 = vmatprep.mubr.bf16.mxu0 %v663
        %1406 = vmatmul.mubr.bf16.gmra.mrb[0].mxu0 %v662
        %v1407 = vpop.f32.mrb[0].mxu0
        %v1408 = vadd.f32 %v1295, %v1407
        %v1409 = vpop.f32.mrb[0].mxu0
        %v1410 = vadd.f32 %v1297, %v1409
        %v1411 = vpop.f32.mrb[0].mxu0
        %v1412 = vadd.f32 %v1299, %v1411
        %v1413 = vpop.f32.mrb[0].mxu0
        %v1414 = vadd.f32 %v1301, %v1413
        %1415 = vmatprep.mubr.bf16.mxu0 %v669
        %1416 = vmatmul.mubr.bf16.gmra.mrb[0].mxu0 %v668
        %v1417 = vpop.f32.mrb[0].mxu0
        %v1418 = vadd.f32 %v1305, %v1417
        %v1419 = vpop.f32.mrb[0].mxu0
        %v1420 = vadd.f32 %v1307, %v1419
        %v1421 = vpop.f32.mrb[0].mxu0
        %v1422 = vadd.f32 %v1309, %v1421
        %v1423 = vpop.f32.mrb[0].mxu0
        %v1424 = vadd.f32 %v1311, %v1423
        %1425 = vdwg.mxu0
        %1426 = vmatprep.subr.bf16.mxu0 %v1073
        %1427 = vmatpush1.bf16.msra.mxu0 %v1072
        %1428 = vmatprep.subr.bf16.mxu0 %v1075
        %1429 = vmatpush1.bf16.msra.mxu0 %v1074
        %1430 = vmatprep.subr.bf16.mxu0 %v1077
        %1431 = vmatpush1.bf16.msra.mxu0 %v1076
        %1432 = vmatprep.subr.bf16.mxu0 %v1079
        %1433 = vmatpush1.bf16.msra.mxu0 %v1078
        %1434 = vmatprep.subr.bf16.mxu0 %v1081
        %1435 = vmatpush1.bf16.msra.mxu0 %v1080
        %1436 = vmatprep.subr.bf16.mxu0 %v1083
        %1437 = vmatpush1.bf16.msra.mxu0 %v1082
        %1438 = vmatprep.subr.bf16.mxu0 %v1085
        %1439 = vmatpush1.bf16.msra.mxu0 %v1084
        %1440 = vmatprep.subr.bf16.mxu0 %v1087
        %1441 = vmatpush1.bf16.msra.mxu0 %v1086
        %1442 = vmatprep.subr.bf16.mxu0 %v1089
        %1443 = vmatpush1.bf16.msra.mxu0 %v1088
        %1444 = vmatprep.subr.bf16.mxu0 %v1091
        %1445 = vmatpush1.bf16.msra.mxu0 %v1090
        %1446 = vmatprep.subr.bf16.mxu0 %v1093
        %1447 = vmatpush1.bf16.msra.mxu0 %v1092
        %1448 = vmatprep.subr.bf16.mxu0 %v1095
        %1449 = vmatpush1.bf16.msra.mxu0 %v1094
        %1450 = vmatprep.subr.bf16.mxu0 %v1097
        %1451 = vmatpush1.bf16.msra.mxu0 %v1096
        %1452 = vmatprep.subr.bf16.mxu0 %v1099
        %1453 = vmatpush1.bf16.msra.mxu0 %v1098
        %1454 = vmatprep.subr.bf16.mxu0 %v1101
        %1455 = vmatpush1.bf16.msra.mxu0 %v1100
        %1456 = vmatprep.subr.bf16.mxu0 %v1103
        %1457 = vmatpush1.bf16.msra.mxu0 %v1102
        %1458 = vmatprep.mubr.bf16.mxu0 %v629
        %1459 = vmatmul.mubr.bf16.gmra.mrb[0].mxu0 %v628
        %v1460 = vpop.f32.mrb[0].mxu0
        %v1461 = vadd.f32 %v1348, %v1460
        %v1462 = vpop.f32.mrb[0].mxu0
        %v1463 = vadd.f32 %v1350, %v1462
        %v1464 = vpop.f32.mrb[0].mxu0
        %v1465 = vadd.f32 %v1352, %v1464
        %v1466 = vpop.f32.mrb[0].mxu0
        %v1467 = vadd.f32 %v1354, %v1466
        %1468 = vmatprep.mubr.bf16.mxu0 %v635
        %1469 = vmatmul.mubr.bf16.gmra.mrb[0].mxu0 %v634
        %v1470 = vpop.f32.mrb[0].mxu0
        %v1471 = vadd.f32 %v1358, %v1470
        %v1472 = vpop.f32.mrb[0].mxu0
        %v1473 = vadd.f32 %v1360, %v1472
        %v1474 = vpop.f32.mrb[0].mxu0
        %v1475 = vadd.f32 %v1362, %v1474
        %v1476 = vpop.f32.mrb[0].mxu0
        %v1477 = vadd.f32 %v1364, %v1476
        %1478 = vmatprep.mubr.bf16.mxu0 %v641
        %1479 = vmatmul.mubr.bf16.gmra.mrb[0].mxu0 %v640
        %v1480 = vpop.f32.mrb[0].mxu0
        %v1481 = vadd.f32 %v1368, %v1480
        %v1482 = vpop.f32.mrb[0].mxu0
        %v1483 = vadd.f32 %v1370, %v1482
        %v1484 = vpop.f32.mrb[0].mxu0
        %v1485 = vadd.f32 %v1372, %v1484
        %v1486 = vpop.f32.mrb[0].mxu0
        %v1487 = vadd.f32 %v1374, %v1486
        %1488 = vmatprep.mubr.bf16.mxu0 %v647
        %1489 = vmatmul.mubr.bf16.gmra.mrb[0].mxu0 %v646
        %v1490 = vpop.f32.mrb[0].mxu0
        %v1491 = vadd.f32 %v1378, %v1490
        %v1492 = vpop.f32.mrb[0].mxu0
        %v1493 = vadd.f32 %v1380, %v1492
        %v1494 = vpop.f32.mrb[0].mxu0
        %v1495 = vadd.f32 %v1382, %v1494
        %v1496 = vpop.f32.mrb[0].mxu0
        %v1497 = vadd.f32 %v1384, %v1496
        %1498 = vmatprep.mubr.bf16.mxu0 %v653
        %1499 = vmatmul.mubr.bf16.gmra.mrb[0].mxu0 %v652
        %v1500 = vpop.f32.mrb[0].mxu0
        %v1501 = vadd.f32 %v1388, %v1500
        %v1502 = vpop.f32.mrb[0].mxu0
        %v1503 = vadd.f32 %v1390, %v1502
        %v1504 = vpop.f32.mrb[0].mxu0
        %v1505 = vadd.f32 %v1392, %v1504
        %v1506 = vpop.f32.mrb[0].mxu0
        %v1507 = vadd.f32 %v1394, %v1506
        %1508 = vmatprep.mubr.bf16.mxu0 %v659
        %1509 = vmatmul.mubr.bf16.gmra.mrb[0].mxu0 %v658
        %v1510 = vpop.f32.mrb[0].mxu0
        %v1511 = vadd.f32 %v1398, %v1510
        %v1512 = vpop.f32.mrb[0].mxu0
        %v1513 = vadd.f32 %v1400, %v1512
        %v1514 = vpop.f32.mrb[0].mxu0
        %v1515 = vadd.f32 %v1402, %v1514
        %v1516 = vpop.f32.mrb[0].mxu0
        %v1517 = vadd.f32 %v1404, %v1516
        %1518 = vmatprep.mubr.bf16.mxu0 %v665
        %1519 = vmatmul.mubr.bf16.gmra.mrb[0].mxu0 %v664
        %v1520 = vpop.f32.mrb[0].mxu0
        %v1521 = vadd.f32 %v1408, %v1520
        %v1522 = vpop.f32.mrb[0].mxu0
        %v1523 = vadd.f32 %v1410, %v1522
        %v1524 = vpop.f32.mrb[0].mxu0
        %v1525 = vadd.f32 %v1412, %v1524
        %v1526 = vpop.f32.mrb[0].mxu0
        %v1527 = vadd.f32 %v1414, %v1526
        %1528 = vmatprep.mubr.bf16.mxu0 %v671
        %1529 = vmatmul.mubr.bf16.gmra.mrb[0].mxu0 %v670
        %v1530 = vpop.f32.mrb[0].mxu0
        %v1531 = vadd.f32 %v1418, %v1530
        %v1532 = vpop.f32.mrb[0].mxu0
        %v1533 = vadd.f32 %v1420, %v1532
        %v1534 = vpop.f32.mrb[0].mxu0
        %v1535 = vadd.f32 %v1422, %v1534
        %v1536 = vpop.f32.mrb[0].mxu0
        %v1537 = vadd.f32 %v1424, %v1536
        %1538 = vdwg.mxu0
        %v1539 = vadd.f32 %v304, %v1461
        %v1540 = vadd.f32 %v305, %v1463
        %v1541 = vadd.f32 %v306, %v1465
        %v1542 = vadd.f32 %v307, %v1467
        %v1543 = vadd.f32 %v308, %v1471
        %v1544 = vadd.f32 %v309, %v1473
        %v1545 = vadd.f32 %v310, %v1475
        %v1546 = vadd.f32 %v311, %v1477
        %v1547 = vadd.f32 %v312, %v1481
        %v1548 = vadd.f32 %v313, %v1483
        %v1549 = vadd.f32 %v314, %v1485
        %v1550 = vadd.f32 %v315, %v1487
        %v1551 = vadd.f32 %v316, %v1491
        %v1552 = vadd.f32 %v317, %v1493
        %v1553 = vadd.f32 %v318, %v1495
        %v1554 = vadd.f32 %v319, %v1497
        %v1555 = vadd.f32 %v320, %v1501
        %v1556 = vadd.f32 %v321, %v1503
        %v1557 = vadd.f32 %v322, %v1505
        %v1558 = vadd.f32 %v323, %v1507
        %v1559 = vadd.f32 %v324, %v1511
        %v1560 = vadd.f32 %v325, %v1513
        %v1561 = vadd.f32 %v326, %v1515
        %v1562 = vadd.f32 %v327, %v1517
        %v1563 = vadd.f32 %v328, %v1521
        %v1564 = vadd.f32 %v329, %v1523
        %v1565 = vadd.f32 %v330, %v1525
        %v1566 = vadd.f32 %v331, %v1527
        %v1567 = vadd.f32 %v332, %v1531
        %v1568 = vadd.f32 %v333, %v1533
        %v1569 = vadd.f32 %v334, %v1535
        %v1570 = vadd.f32 %v335, %v1537
        %1571 = vst [vmem:[#allocation2] sm:$0xff] %v1539
        %1572 = vst [vmem:[#allocation2 + $0x8] sm:$0xff] %v1540
        %1573 = vst [vmem:[#allocation2 + $0x10] sm:$0xff] %v1541
        %1574 = vst [vmem:[#allocation2 + $0x18] sm:$0xff] %v1542
        %1575 = vst [vmem:[#allocation2 + $0x20] sm:$0xff] %v1543
        %1576 = vst [vmem:[#allocation2 + $0x28] sm:$0xff] %v1544
        %1577 = vst [vmem:[#allocation2 + $0x30] sm:$0xff] %v1545
        %1578 = vst [vmem:[#allocation2 + $0x38] sm:$0xff] %v1546
        %1579 = vst [vmem:[#allocation2 + $0x40] sm:$0xff] %v1547
        %1580 = vst [vmem:[#allocation2 + $0x48] sm:$0xff] %v1548
        %1581 = vst [vmem:[#allocation2 + $0x50] sm:$0xff] %v1549
        %1582 = vst [vmem:[#allocation2 + $0x58] sm:$0xff] %v1550
        %1583 = vst [vmem:[#allocation2 + $0x60] sm:$0xff] %v1551
        %1584 = vst [vmem:[#allocation2 + $0x68] sm:$0xff] %v1552
        %1585 = vst [vmem:[#allocation2 + $0x70] sm:$0xff] %v1553
        %1586 = vst [vmem:[#allocation2 + $0x78] sm:$0xff] %v1554
        %1587 = vst [vmem:[#allocation2 + $0x80] sm:$0xff] %v1555
        %1588 = vst [vmem:[#allocation2 + $0x88] sm:$0xff] %v1556
        %1589 = vst [vmem:[#allocation2 + $0x90] sm:$0xff] %v1557
        %1590 = vst [vmem:[#allocation2 + $0x98] sm:$0xff] %v1558
        %1591 = vst [vmem:[#allocation2 + $0xa0] sm:$0xff] %v1559
        %1592 = vst [vmem:[#allocation2 + $0xa8] sm:$0xff] %v1560
        %1593 = vst [vmem:[#allocation2 + $0xb0] sm:$0xff] %v1561
        %1594 = vst [vmem:[#allocation2 + $0xb8] sm:$0xff] %v1562
        %1595 = vst [vmem:[#allocation2 + $0xc0] sm:$0xff] %v1563
        %1596 = vst [vmem:[#allocation2 + $0xc8] sm:$0xff] %v1564
        %1597 = vst [vmem:[#allocation2 + $0xd0] sm:$0xff] %v1565
        %1598 = vst [vmem:[#allocation2 + $0xd8] sm:$0xff] %v1566
        %1599 = vst [vmem:[#allocation2 + $0xe0] sm:$0xff] %v1567
        %1600 = vst [vmem:[#allocation2 + $0xe8] sm:$0xff] %v1568
        %1601 = vst [vmem:[#allocation2 + $0xf0] sm:$0xff] %v1569
        %1602 = vst [vmem:[#allocation2 + $0xf8] sm:$0xff] %v1570
        // Predicated region
        $region45: #{tpu_custom_call.1} parent=31 // pred_check
          %p1603 = pneg %p268
        $region46: #{tpu_custom_call.1} parent=31 // pred_check_branch
          %1605 = sbr.rel (%p1603) target = $region48
        $region47: #{tpu_custom_call.1} parent=31 // pred_region
          %v1606 = vld [vmem:[#allocation2] sm:$0xff]
          %v1607 = vld [vmem:[#allocation2 + $0x8] sm:$0xff]
          %v1608 = vld [vmem:[#allocation2 + $0x10] sm:$0xff]
          %v1609 = vld [vmem:[#allocation2 + $0x18] sm:$0xff]
          %v1610 = vld [vmem:[#allocation2 + $0x20] sm:$0xff]
          %v1611 = vld [vmem:[#allocation2 + $0x28] sm:$0xff]
          %v1612 = vld [vmem:[#allocation2 + $0x30] sm:$0xff]
          %v1613 = vld [vmem:[#allocation2 + $0x38] sm:$0xff]
          %v1614 = vld [vmem:[#allocation2 + $0x40] sm:$0xff]
          %v1615 = vld [vmem:[#allocation2 + $0x48] sm:$0xff]
          %v1616 = vld [vmem:[#allocation2 + $0x50] sm:$0xff]
          %v1617 = vld [vmem:[#allocation2 + $0x58] sm:$0xff]
          %v1618 = vld [vmem:[#allocation2 + $0x60] sm:$0xff]
          %v1619 = vld [vmem:[#allocation2 + $0x68] sm:$0xff]
          %v1620 = vld [vmem:[#allocation2 + $0x70] sm:$0xff]
          %v1621 = vld [vmem:[#allocation2 + $0x78] sm:$0xff]
          %v1622 = vld [vmem:[#allocation2 + $0x80] sm:$0xff]
          %v1623 = vld [vmem:[#allocation2 + $0x88] sm:$0xff]
          %v1624 = vld [vmem:[#allocation2 + $0x90] sm:$0xff]
          %v1625 = vld [vmem:[#allocation2 + $0x98] sm:$0xff]
          %v1626 = vld [vmem:[#allocation2 + $0xa0] sm:$0xff]
          %v1627 = vld [vmem:[#allocation2 + $0xa8] sm:$0xff]
          %v1628 = vld [vmem:[#allocation2 + $0xb0] sm:$0xff]
          %v1629 = vld [vmem:[#allocation2 + $0xb8] sm:$0xff]
          %v1630 = vld [vmem:[#allocation2 + $0xc0] sm:$0xff]
          %v1631 = vld [vmem:[#allocation2 + $0xc8] sm:$0xff]
          %v1632 = vld [vmem:[#allocation2 + $0xd0] sm:$0xff]
          %v1633 = vld [vmem:[#allocation2 + $0xd8] sm:$0xff]
          %v1634 = vld [vmem:[#allocation2 + $0xe0] sm:$0xff]
          %v1635 = vld [vmem:[#allocation2 + $0xe8] sm:$0xff]
          %v1636 = vld [vmem:[#allocation2 + $0xf0] sm:$0xff]
          %v1637 = vld [vmem:[#allocation2 + $0xf8] sm:$0xff]
          %v1638 = vld [vmem:[%s264] sm:$0x3]
          %v1640 = vlaneseq
          %v1641 = vshrl.u32 %v1640, 7
          %v1642 = vsub.s32 0, %v1641
          %v1643 = vrot.slane %v1638, %v1642
          %v1644 = vlaneseq
          %v1645 = vshrl.u32 %v1644, 7
          %v1646 = vsub.s32 1, %v1645
          %v1647 = vrot.slane %v1638, %v1646
          %v1650 = vadd.f32 %v1606, %v1643
          %v1651 = vadd.f32 %v1607, %v1647
          %v1652 = vadd.f32 %v1608, %v1643
          %v1653 = vadd.f32 %v1609, %v1647
          %v1654 = vadd.f32 %v1610, %v1643
          %v1655 = vadd.f32 %v1611, %v1647
          %v1656 = vadd.f32 %v1612, %v1643
          %v1657 = vadd.f32 %v1613, %v1647
          %v1658 = vadd.f32 %v1614, %v1643
          %v1659 = vadd.f32 %v1615, %v1647
          %v1660 = vadd.f32 %v1616, %v1643
          %v1661 = vadd.f32 %v1617, %v1647
          %v1662 = vadd.f32 %v1618, %v1643
          %v1663 = vadd.f32 %v1619, %v1647
          %v1664 = vadd.f32 %v1620, %v1643
          %v1665 = vadd.f32 %v1621, %v1647
          %v1666 = vadd.f32 %v1622, %v1643
          %v1667 = vadd.f32 %v1623, %v1647
          %v1668 = vadd.f32 %v1624, %v1643
          %v1669 = vadd.f32 %v1625, %v1647
          %v1670 = vadd.f32 %v1626, %v1643
          %v1671 = vadd.f32 %v1627, %v1647
          %v1672 = vadd.f32 %v1628, %v1643
          %v1673 = vadd.f32 %v1629, %v1647
          %v1674 = vadd.f32 %v1630, %v1643
          %v1675 = vadd.f32 %v1631, %v1647
          %v1676 = vadd.f32 %v1632, %v1643
          %v1677 = vadd.f32 %v1633, %v1647
          %v1678 = vadd.f32 %v1634, %v1643
          %v1679 = vadd.f32 %v1635, %v1647
          %v1680 = vadd.f32 %v1636, %v1643
          %v1681 = vadd.f32 %v1637, %v1647
          %v1682 = vpack.c.bf16 %v1652, %v1650
          %v1683 = vpack.c.bf16 %v1653, %v1651
          %v1684 = vpack.c.bf16 %v1656, %v1654
          %v1685 = vpack.c.bf16 %v1657, %v1655
          %v1686 = vpack.c.bf16 %v1660, %v1658
          %v1687 = vpack.c.bf16 %v1661, %v1659
          %v1688 = vpack.c.bf16 %v1664, %v1662
          %v1689 = vpack.c.bf16 %v1665, %v1663
          %v1690 = vpack.c.bf16 %v1668, %v1666
          %v1691 = vpack.c.bf16 %v1669, %v1667
          %v1692 = vpack.c.bf16 %v1672, %v1670
          %v1693 = vpack.c.bf16 %v1673, %v1671
          %v1694 = vpack.c.bf16 %v1676, %v1674
          %v1695 = vpack.c.bf16 %v1677, %v1675
          %v1696 = vpack.c.bf16 %v1680, %v1678
          %v1697 = vpack.c.bf16 %v1681, %v1679
          %v1714 = vunpack.c.l.b16 %v1682
          %v1715 = vunpack.c.l.b16 %v1683
          %v1716 = vunpack.c.h.b16 %v1682
          %v1717 = vunpack.c.h.b16 %v1683
          %v1718 = vunpack.c.l.b16 %v1684
          %v1719 = vunpack.c.l.b16 %v1685
          %v1720 = vunpack.c.h.b16 %v1684
          %v1721 = vunpack.c.h.b16 %v1685
          %v1722 = vunpack.c.l.b16 %v1686
          %v1723 = vunpack.c.l.b16 %v1687
          %v1724 = vunpack.c.h.b16 %v1686
          %v1725 = vunpack.c.h.b16 %v1687
          %v1726 = vunpack.c.l.b16 %v1688
          %v1727 = vunpack.c.l.b16 %v1689
          %v1728 = vunpack.c.h.b16 %v1688
          %v1729 = vunpack.c.h.b16 %v1689
          %v1730 = vunpack.c.l.b16 %v1690
          %v1731 = vunpack.c.l.b16 %v1691
          %v1732 = vunpack.c.h.b16 %v1690
          %v1733 = vunpack.c.h.b16 %v1691
          %v1734 = vunpack.c.l.b16 %v1692
          %v1735 = vunpack.c.l.b16 %v1693
          %v1736 = vunpack.c.h.b16 %v1692
          %v1737 = vunpack.c.h.b16 %v1693
          %v1738 = vunpack.c.l.b16 %v1694
          %v1739 = vunpack.c.l.b16 %v1695
          %v1740 = vunpack.c.h.b16 %v1694
          %v1741 = vunpack.c.h.b16 %v1695
          %v1742 = vunpack.c.l.b16 %v1696
          %v1743 = vunpack.c.l.b16 %v1697
          %v1744 = vunpack.c.h.b16 %v1696
          %v1745 = vunpack.c.h.b16 %v1697
          %v1746 = vpack.c.b16 %v1715, %v1714
          %v1747 = vpack.c.b16 %v1717, %v1716
          %v1748 = vpack.c.b16 %v1719, %v1718
          %v1749 = vpack.c.b16 %v1721, %v1720
          %v1750 = vpack.c.b16 %v1723, %v1722
          %v1751 = vpack.c.b16 %v1725, %v1724
          %v1752 = vpack.c.b16 %v1727, %v1726
          %v1753 = vpack.c.b16 %v1729, %v1728
          %v1754 = vpack.c.b16 %v1731, %v1730
          %v1755 = vpack.c.b16 %v1733, %v1732
          %v1756 = vpack.c.b16 %v1735, %v1734
          %v1757 = vpack.c.b16 %v1737, %v1736
          %v1758 = vpack.c.b16 %v1739, %v1738
          %v1759 = vpack.c.b16 %v1741, %v1740
          %v1760 = vpack.c.b16 %v1743, %v1742
          %v1761 = vpack.c.b16 %v1745, %v1744
          %1778 = vst [vmem:[%s256] sm:$0xff] %v1746
          %1779 = vst [vmem:[%s256 + $0x8] sm:$0xff] %v1747
          %1780 = vst [vmem:[%s256 + $0x10] sm:$0xff] %v1748
          %1781 = vst [vmem:[%s256 + $0x18] sm:$0xff] %v1749
          %1782 = vst [vmem:[%s256 + $0x20] sm:$0xff] %v1750
          %1783 = vst [vmem:[%s256 + $0x28] sm:$0xff] %v1751
          %1784 = vst [vmem:[%s256 + $0x30] sm:$0xff] %v1752
          %1785 = vst [vmem:[%s256 + $0x38] sm:$0xff] %v1753
          %1786 = vst [vmem:[%s256 + $0x40] sm:$0xff] %v1754
          %1787 = vst [vmem:[%s256 + $0x48] sm:$0xff] %v1755
          %1788 = vst [vmem:[%s256 + $0x50] sm:$0xff] %v1756
          %1789 = vst [vmem:[%s256 + $0x58] sm:$0xff] %v1757
          %1790 = vst [vmem:[%s256 + $0x60] sm:$0xff] %v1758
          %1791 = vst [vmem:[%s256 + $0x68] sm:$0xff] %v1759
          %1792 = vst [vmem:[%s256 + $0x70] sm:$0xff] %v1760
          %1793 = vst [vmem:[%s256 + $0x78] sm:$0xff] %v1761
        $region48: #{tpu_custom_call.1} parent=31 // pred_fallthru
          _
        %s1794 = sand.u32 %s132, 1
        %s1795 = scalar_lea.sflag [#allocation5], %s1794
        %s1796 = sand.u32 %s132, 1
        %s1797 = smul.addr %s1796, 128
        %s1798 = scalar_lea.vmem [#allocation8], %s1797
        // Predicated region
        $region49: #{tpu_custom_call.1} parent=31 // pred_check
          %p1799 = pneg %p142
        $region50: #{tpu_custom_call.1} parent=31 // pred_check_branch
          %1801 = sbr.rel (%p1799) target = $region52
        $region51: #{tpu_custom_call.1} parent=31 // pred_region
          %s1802 = smul.u32 16, %s26
          %s1803 = smul.u32 2, %s27
          %s1805 = ssub.s32 2048, 2048
          %1806 = vsyncadd %s1795, %s1805
          %s1807 = smul.addr %s1802, 2
          %s1808 = sadd.s32 %s1803, %s1807
          %s1809 = smul.addr %s1808, 64
          %s1810 = scalar_lea.hbm %s3, %s1809
          %s1811 = sshll.u32 %s1798, 4
          %s1812 = int_to_ptr.vmem [resolvable:$true] %s1811
          %1817 = dma.vmem_to_hbm [thread:$0]  %s1812, 2048, %s1810, %s1795, 128, 128, 8
        $region52: #{tpu_custom_call.1} parent=31 // pred_fallthru
          _
      $region32: #{tpu_custom_call.1} parent=5 // pred_fallthru
        _
      %p1818 = scmp.le.s32.totalorder 2, %s16
      // Predicated region
      $region53: #{tpu_custom_call.1} parent=5 // pred_check
        %p1819 = pneg %p1818
      $region54: #{tpu_custom_call.1} parent=5 // pred_check_branch
        %1821 = sbr.rel (%p1819) target = $region56
      $region55: #{tpu_custom_call.1} parent=5 // pred_region
        %s1822 = ssub.s32 %s16, 2
        // Predicated region
        $region57: #{tpu_custom_call.1} parent=55 // pred_check
          %p1823 = pneg %p148
        $region58: #{tpu_custom_call.1} parent=55 // pred_check_branch
          %1825 = sbr.rel (%p1823) target = $region60
        $region59: #{tpu_custom_call.1} parent=55 // pred_region
          %s1826 = sand.u32 %s133, 1
          %s1827 = scalar_lea.sflag [#allocation5], %s1826
          %s1828 = sand.u32 %s133, 1
          %s1829 = smul.addr %s1828, 128
          %s1830 = scalar_lea.vmem [#allocation8], %s1829
          %1831 = dma.done %s1827, 2048
        $region60: #{tpu_custom_call.1} parent=55 // pred_fallthru
          _
      $region56: #{tpu_custom_call.1} parent=5 // pred_fallthru
        _
    $region6: #{tpu_custom_call.1} parent=1 // loop_footer
      %s20 = sadd.s32 1, %s16
    $region7: #{tpu_custom_call.1} parent=1 // loop_footer_branch
      %15 = sbr.rel target = $region3
    $region8: #{tpu_custom_call.1} parent=1 // loop_exit
      _
    %1832 = vsyncpa [#allocation4], 1
    %s1833 = scalar_lea.sflag [#allocation4], 1
    %1834 = vsyncpa %s1833, 1
    %1835 = vsyncpa [#allocation7], 1
    %1836 = vsyncpa [#allocation5], 1
    %s1837 = scalar_lea.sflag [#allocation5], 1
    %1838 = vsyncpa %s1837, 1

</llo_original>
